<compile_context>
chip_gen: v5e
topology: v5e:2x2
jax: 0.10.0
libtpu: 0.0.40
codegen_flags: <defaults>
</compile_context>

<pallas_src>
import functools

import jax
import jax.numpy as jnp
import numpy as np
from jax.experimental import pallas as pl
from jax.experimental.pallas import tpu as pltpu


def _ealstm_kernel(
    num_layers, hidden_size, seq_len, batch,
    # inputs (batch already padded to a sublane multiple)
    x_ref,        # [T*B, In]   time-major, flattened
    static_ref,   # [B, S]
    future_ref,   # [B, Fo]     flattened future forcing
    # EA-LSTM weights (gate order along last axis: f | o | g)
    w_shf_ref, b_shf_ref,     # [S, L*H], [1, L*H]    fused static->input-gate
    w_g0x_ref, b_g0_ref,      # [In, 3H], [1, 3H]     layer-0 dynamic_to_gates
    w_hid0_ref,               # [H, 3H]   bf16        layer-0 recurrent (L != 2)
    w_big_ref,                # [2H, 6H]  bf16        fused recurrent RHS (L == 2)
    w_cat_ref, b_cat_ref,     # [Lm1, 2H, 3H] bf16, [Lm1, 1, 3H] f32 (L >= 3)
    # packed projection + future-forcing head
    w_h1_ref, b_h1_ref,       # [H+Fo, 2H], [1, 2H]
    w_h2_ref, b_h2_ref,       # [2H, O],   [1, O]
    # output
    out_ref,                  # [B, O]
):
    L, H, T, B = num_layers, hidden_size, seq_len, batch
    H3 = 3 * H
    f32 = jnp.float32
    bf16 = jnp.bfloat16

    static_x = static_ref[...]  # [B, S]

    # Entity-aware input gates for all layers in ONE matmul (hoisted, constant
    # across time); lane-slice per layer.
    i_all = jax.nn.sigmoid(
        jnp.dot(static_x, w_shf_ref[...], preferred_element_type=f32)
        + b_shf_ref[...]
    )
    i_gates = [i_all[:, l * H:(l + 1) * H] for l in range(L)]

    # Hoisted layer-0 input projection for ALL timesteps at once (f32, off the
    # recurrent critical path): [T*B, In] @ [In, 3H] + b -> [T*B, 3H]
    x_gates = (
        jnp.dot(x_ref[...], w_g0x_ref[...], preferred_element_type=f32)
        + b_g0_ref[...]
    )

    def apply_gates(gates, c_prev, i_g):
        # gates: [B, 3H] fused pre-activation (f | o | g).
        # Single EUP sigmoid over lanes 0:2H covers both f and o.
        fo = jax.nn.sigmoid(gates[:, 0:2 * H])
        g_t = jnp.tanh(gates[:, 2 * H:H3])
        c_1 = fo[:, 0:H] * c_prev + i_g * g_t
        h_1 = fo[:, H:2 * H] * jnp.tanh(c_1)
        return h_1, c_1

    if L == 2:
        # --- fused 2-layer path: ONE recurrent matmul per timestep ----------
        w_big = w_big_ref[...]                               # bf16 [2H, 6H]
        b_cat1 = jnp.broadcast_to(b_cat_ref[0], (B, H3))     # hoisted bias
        h0 = jnp.zeros((B, H), f32)
        h1 = jnp.zeros((B, H), f32)
        c0 = jnp.zeros((B, H), f32)
        c1 = jnp.zeros((B, H), f32)
        rec0 = jnp.zeros((B, H3), f32)                       # h0_{-1} @ w_hid0 = 0
        for t in range(T):                                    # statically unrolled
            gates0 = x_gates[t * B:(t + 1) * B, :] + rec0
            h0, c0 = apply_gates(gates0, c0, i_gates[0])
            hh = jnp.concatenate([h0, h1], axis=-1).astype(bf16)   # [B, 2H]
            big = jnp.dot(hh, w_big, preferred_element_type=f32)   # [B, 6H]
            rec0 = big[:, H3:2 * H3]          # layer-0 recurrent term for t+1
            gates1 = big[:, 0:H3] + b_cat1    # layer-1 gates at step t
            h1, c1 = apply_gates(gates1, c1, i_gates[1])
        final_h = h1
    else:
        # --- generic path (L == 1 or L >= 3) ---------------------------------
        w_hid0 = w_hid0_ref[...]                              # bf16 [H, 3H]
        w_cats = [w_cat_ref[l - 1] for l in range(1, L)]      # bf16 [2H, 3H]
        b_cats = [jnp.broadcast_to(b_cat_ref[l - 1], (B, H3)) for l in range(1, L)]
        hs = [jnp.zeros((B, H), f32) for _ in range(L)]
        cs = [jnp.zeros((B, H), f32) for _ in range(L)]
        for t in range(T):
            gates0 = x_gates[t * B:(t + 1) * B, :] + jnp.dot(
                hs[0].astype(bf16), w_hid0, preferred_element_type=f32
            )
            hs[0], cs[0] = apply_gates(gates0, cs[0], i_gates[0])
            for l in range(1, L):
                hh = jnp.concatenate([hs[l - 1], hs[l]], axis=-1).astype(bf16)
                gates = (
                    jnp.dot(hh, w_cats[l - 1], preferred_element_type=f32)
                    + b_cats[l - 1]
                )
                hs[l], cs[l] = apply_gates(gates, cs[l], i_gates[l])
        final_h = hs[L - 1]

    # Packed heads (2 matmuls total, off the recurrent chain, f32):
    #   relu([final_h | future] @ blockdiag(w_p1, w_f1) + [b_p1 | b_f1])
    #   @ vstack(w_p2, w_f2) + (b_p2 + b_f2)
    head_in = jnp.concatenate([final_h, future_ref[...]], axis=-1)
    p = jnp.maximum(
        jnp.dot(head_in, w_h1_ref[...], preferred_element_type=f32) + b_h1_ref[...],
        0.0,
    )
    out = jnp.dot(p, w_h2_ref[...], preferred_element_type=f32) + b_h2_ref[...]
    out_ref[...] = out


def ealstm_forward(x, static, future, params, *, num_layers, hidden_size):
    """x: [B, T, In], static: [B, S], future: [B, output_len, F] -> [B, output_len, 1]."""
    B, T, In = x.shape
    L, H = num_layers, hidden_size
    O = params["w_p2"].shape[1]

    # Pad batch to a full 8-sublane tile so every per-timestep slab is an
    # aligned (8, *) slice and matmuls use full sublanes. Padded rows carry
    # zeros and are stripped from the output (no cross-batch reduction).
    Bp = max(8, ((B + 7) // 8) * 8)
    pad_b = Bp - B

    # Time-major flatten so the kernel's hoisted layer-0 projection yields
    # contiguous per-timestep [Bp, 3H] slabs (static aligned sublane slices).
    x_tm = jnp.transpose(x, (1, 0, 2))                      # [T, B, In]
    x_tm = jnp.pad(x_tm, ((0, 0), (0, pad_b), (0, 0)))
    x_tb = x_tm.reshape(T * Bp, In)
    static_p = jnp.pad(static, ((0, pad_b), (0, 0)))
    future_flat = jnp.pad(future.reshape(B, -1), ((0, pad_b), (0, 0)))
    Fo = future_flat.shape[1]

    # --- weight layout glue: fuse the 3 gates along lanes (order f | o | g) ---
    w_dyn_f = jnp.concatenate([params["w_dyn"][:, g] for g in range(3)], axis=-1)  # [L, In, 3H]
    b_dyn_f = jnp.concatenate([params["b_dyn"][:, g] for g in range(3)], axis=-1)  # [L, 1, 3H]
    w_hid_f = jnp.concatenate([params["w_hid"][:, g] for g in range(3)], axis=-1)  # [L, H, 3H]

    w_g0x, b_g0, w_hid0 = w_dyn_f[0], b_dyn_f[0], w_hid_f[0]

    if L > 1:
        # Pre-compose hidden_to_input with dynamic_to_gates (exact in eval mode):
        #   gates_l = [h_{l-1}, h_l] @ [[W_h2i @ W_dyn_l], [W_hid_l]]
        #             + (b_h2i @ W_dyn_l + b_dyn_l)
        w_lo = jnp.einsum("lhi,lig->lhg", params["w_h2i"], w_dyn_f[1:])            # [L-1, H, 3H]
        w_cat = jnp.concatenate([w_lo, w_hid_f[1:]], axis=1)                       # [L-1, 2H, 3H]
        b_cat = jnp.einsum("lxi,lig->lxg", params["b_h2i"], w_dyn_f[1:]) + b_dyn_f[1:]
    else:
        w_cat = jnp.zeros((1, 2 * H, 3 * H), jnp.float32)
        b_cat = jnp.zeros((1, 1, 3 * H), jnp.float32)

    if L == 2:
        # Fused per-step recurrent RHS: [w_cat | vstack(w_hid0, 0)]  -> [2H, 6H].
        right = jnp.concatenate([w_hid0, jnp.zeros((H, 3 * H), jnp.float32)], axis=0)
        w_big = jnp.concatenate([w_cat[0], right], axis=-1)
    else:
        w_big = jnp.zeros((2 * H, 6 * H), jnp.float32)

    # Recurrent-path weights as bf16 (f32 accumulation in-kernel).
    w_hid0_bf = w_hid0.astype(jnp.bfloat16)
    w_big_bf = w_big.astype(jnp.bfloat16)
    w_cat_bf = w_cat.astype(jnp.bfloat16)

    # Fused static->input-gate weights: [S, L*H] / [1, L*H].
    S = static.shape[1]
    w_shf = jnp.transpose(params["w_sh"], (1, 0, 2)).reshape(S, L * H)
    b_shf = jnp.transpose(params["b_sh"], (1, 0, 2)).reshape(1, L * H)

    # Packed heads: block-diagonal first layer, stacked second layer.
    w_head1 = jnp.zeros((H + Fo, 2 * H), jnp.float32)
    w_head1 = w_head1.at[:H, :H].set(params["w_p1"]).at[H:, H:].set(params["w_f1"])
    b_head1 = jnp.concatenate([params["b_p1"], params["b_f1"]], axis=-1)   # [1, 2H]
    w_head2 = jnp.concatenate([params["w_p2"], params["w_f2"]], axis=0)    # [2H, O]
    b_head2 = params["b_p2"] + params["b_f2"]                              # [1, O]

    args = (
        x_tb, static_p, future_flat,
        w_shf, b_shf,
        w_g0x, b_g0,
        w_hid0_bf, w_big_bf, w_cat_bf, b_cat,
        w_head1, b_head1, w_head2, b_head2,
    )

    kernel = functools.partial(_ealstm_kernel, L, H, T, Bp)
    out2d = pl.pallas_call(
        kernel,
        out_shape=jax.ShapeDtypeStruct((Bp, O), jnp.float32),
        in_specs=[pl.BlockSpec(memory_space=pltpu.MemorySpace.VMEM)] * len(args),
        out_specs=pl.BlockSpec(memory_space=pltpu.MemorySpace.VMEM),
    )(*args)
    return out2d[:B, :, None]  # strip batch padding; matches PyTorch output.unsqueeze(-1)


def init_params(key, *, input_size, hidden_size, static_size, num_layers,
                output_len, future_input_size):
    H, In, S, L, O = hidden_size, input_size, static_size, num_layers, output_len
    Fo = future_input_size * output_len
    Lm1 = max(L - 1, 1)
    keys = jax.random.split(key, 15)

    def norm(k, shape, fan_in):
        return jax.random.normal(k, shape, jnp.float32) / jnp.sqrt(jnp.float32(fan_in))

    p = {}
    p["w_sh"] = norm(keys[0], (L, S, H), S)
    p["b_sh"] = norm(keys[1], (L, 1, H), S)
    p["w_dyn"] = norm(keys[2], (L, 3, In, H), In)        # gate order: f, o, g
    b_dyn = norm(keys[3], (L, 3, 1, H), In)
    # PyTorch: nn.init.constant_(dynamic_to_gates.bias[:hidden_size], 1.0) -> f-gate bias = 1
    p["b_dyn"] = b_dyn.at[:, 0].set(1.0)
    p["w_hid"] = norm(keys[4], (L, 3, H, H), H)
    p["w_h2i"] = norm(keys[5], (Lm1, H, In), H)
    p["b_h2i"] = norm(keys[6], (Lm1, 1, In), H)
    p["w_p1"] = norm(keys[7], (H, H), H)
    p["b_p1"] = norm(keys[8], (1, H), H)
    p["w_p2"] = norm(keys[9], (H, O), H)
    p["b_p2"] = norm(keys[10], (1, O), H)
    p["w_f1"] = norm(keys[11], (Fo, H), Fo)
    p["b_f1"] = norm(keys[12], (1, H), Fo)
    p["w_f2"] = norm(keys[13], (H, O), H)
    p["b_f2"] = norm(keys[14], (1, O), H)
    return p


def ealstm_reference(x, static, future, params, *, num_layers, hidden_size):
    """Pure-JAX reference mirroring the PyTorch forward (eval mode), unfused weights."""
    B, T, _ = x.shape
    L, H = num_layers, hidden_size
    i_gate = [
        jax.nn.sigmoid(static @ params["w_sh"][l] + params["b_sh"][l, 0]) for l in range(L)
    ]
    h = [jnp.zeros((B, H), jnp.float32) for _ in range(L)]
    c = [jnp.zeros((B, H), jnp.float32) for _ in range(L)]
    for t in range(T):
        layer_input = x[:, t, :]
        for l in range(L):
            if l > 0:
                layer_input = h[l - 1] @ params["w_h2i"][l - 1] + params["b_h2i"][l - 1, 0]
            f = jax.nn.sigmoid(layer_input @ params["w_dyn"][l, 0] + params["b_dyn"][l, 0, 0]
                               + h[l] @ params["w_hid"][l, 0])
            o = jax.nn.sigmoid(layer_input @ params["w_dyn"][l, 1] + params["b_dyn"][l, 1, 0]
                               + h[l] @ params["w_hid"][l, 1])
            g = jnp.tanh(layer_input @ params["w_dyn"][l, 2] + params["b_dyn"][l, 2, 0]
                         + h[l] @ params["w_hid"][l, 2])
            c[l] = f * c[l] + i_gate[l] * g
            h[l] = o * jnp.tanh(c[l])
    final_h = h[L - 1]
    p1 = jax.nn.relu(final_h @ params["w_p1"] + params["b_p1"][0])
    out = p1 @ params["w_p2"] + params["b_p2"][0]
    fut = future.reshape(B, -1)
    q = jax.nn.relu(fut @ params["w_f1"] + params["b_f1"][0])
    out = out + q @ params["w_f2"] + params["b_f2"][0]
    return out[:, :, None]


if __name__ == "__main__":
    # config: input_size=8, hidden_size=32, static_size=6, num_layers=2,
    #         input_len=8, output_len=4, future_input_size=2, dropout=0
    B, T, In, H, S, L, O, F = 4, 8, 8, 32, 6, 2, 4, 2

    key = jax.random.PRNGKey(0)
    k_x, k_s, k_f, k_p = jax.random.split(key, 4)
    x = jax.random.normal(k_x, (B, T, In), jnp.float32)
    static = jax.random.normal(k_s, (B, S), jnp.float32)
    future = jax.random.normal(k_f, (B, O, F), jnp.float32)
    params = init_params(k_p, input_size=In, hidden_size=H, static_size=S,
                         num_layers=L, output_len=O, future_input_size=F)

    out = ealstm_forward(x, static, future, params, num_layers=L, hidden_size=H)
    out = jax.block_until_ready(out)
    assert out.shape == (B, O, 1)

    with jax.default_matmul_precision("highest"):
        ref = jax.block_until_ready(
            ealstm_reference(x, static, future, params, num_layers=L, hidden_size=H)
        )
    # Recurrent-path matmul operands are bf16 (f32 accumulate / f32 carried
    # state), so tolerance is slightly relaxed vs. the pure-f32 reference.
    np.testing.assert_allclose(np.asarray(out), np.asarray(ref), rtol=2e-2, atol=2e-2)

    print("KERNEL_OK")
</pallas_src>

<mosaic_0001>
module attributes {stable_mosaic.version = 11 : i64} {
  func.func @_ealstm_kernel(%arg0: memref<64x8xf32, #tpu.memory_space<vmem>>, %arg1: memref<8x6xf32, #tpu.memory_space<vmem>>, %arg2: memref<8x8xf32, #tpu.memory_space<vmem>>, %arg3: memref<6x64xf32, #tpu.memory_space<vmem>>, %arg4: memref<1x64xf32, #tpu.memory_space<vmem>>, %arg5: memref<8x96xf32, #tpu.memory_space<vmem>>, %arg6: memref<1x96xf32, #tpu.memory_space<vmem>>, %arg7: memref<32x96xbf16, #tpu.memory_space<vmem>>, %arg8: memref<64x192xbf16, #tpu.memory_space<vmem>>, %arg9: memref<1x64x96xbf16, #tpu.memory_space<vmem>>, %arg10: memref<1x1x96xf32, #tpu.memory_space<vmem>>, %arg11: memref<40x64xf32, #tpu.memory_space<vmem>>, %arg12: memref<1x64xf32, #tpu.memory_space<vmem>>, %arg13: memref<64x4xf32, #tpu.memory_space<vmem>>, %arg14: memref<1x4xf32, #tpu.memory_space<vmem>>, %arg15: memref<8x4xf32, #tpu.memory_space<vmem>>) attributes {dimension_semantics = [], scalar_prefetch = 0 : i64, scratch_operands = 0 : i64, tpu.core_type = #tpu.core_type<tc>} {
    %c0 = arith.constant 0 : index
    %c0_0 = arith.constant 0 : index
    %0 = vector.load %arg1[%c0, %c0_0] : memref<8x6xf32, #tpu.memory_space<vmem>>, vector<8x6xf32>
    %c0_1 = arith.constant 0 : index
    %c0_2 = arith.constant 0 : index
    %1 = vector.load %arg3[%c0_1, %c0_2] : memref<6x64xf32, #tpu.memory_space<vmem>>, vector<6x64xf32>
    %cst = arith.constant dense<0.000000e+00> : vector<8x64xf32>
    %2 = tpu.matmul %0, %1, %cst {dimension_numbers = #tpu.dot_dimension_numbers<[1], [0], [0], [1], [0, 0, 1, 1], [], []>} : vector<8x6xf32>, vector<6x64xf32>, vector<8x64xf32> -> vector<8x64xf32>
    %c0_3 = arith.constant 0 : index
    %c0_4 = arith.constant 0 : index
    %3 = vector.load %arg4[%c0_3, %c0_4] : memref<1x64xf32, #tpu.memory_space<vmem>>, vector<1x64xf32>
    %4 = vector.broadcast %3 : vector<1x64xf32> to vector<8x64xf32>
    %5 = arith.addf %2, %4 : vector<8x64xf32>
    %6 = arith.negf %5 : vector<8x64xf32>
    %7 = math.exp %6 : vector<8x64xf32>
    %cst_5 = arith.constant 1.000000e+00 : f32
    %8 = vector.broadcast %cst_5 : f32 to vector<8x64xf32>
    %9 = arith.addf %8, %7 : vector<8x64xf32>
    %10 = arith.divf %8, %9 : vector<8x64xf32>
    %11 = vector.extract_strided_slice %10 {offsets = [0, 0], sizes = [8, 32], strides = [1, 1]} : vector<8x64xf32> to vector<8x32xf32>
    %12 = vector.extract_strided_slice %10 {offsets = [0, 32], sizes = [8, 32], strides = [1, 1]} : vector<8x64xf32> to vector<8x32xf32>
    %c0_6 = arith.constant 0 : index
    %c0_7 = arith.constant 0 : index
    %13 = vector.load %arg0[%c0_6, %c0_7] : memref<64x8xf32, #tpu.memory_space<vmem>>, vector<64x8xf32>
    %c0_8 = arith.constant 0 : index
    %c0_9 = arith.constant 0 : index
    %14 = vector.load %arg5[%c0_8, %c0_9] : memref<8x96xf32, #tpu.memory_space<vmem>>, vector<8x96xf32>
    %cst_10 = arith.constant dense<0.000000e+00> : vector<64x96xf32>
    %15 = tpu.matmul %13, %14, %cst_10 {dimension_numbers = #tpu.dot_dimension_numbers<[1], [0], [0], [1], [0, 0, 1, 1], [], []>} : vector<64x8xf32>, vector<8x96xf32>, vector<64x96xf32> -> vector<64x96xf32>
    %c0_11 = arith.constant 0 : index
    %c0_12 = arith.constant 0 : index
    %16 = vector.load %arg6[%c0_11, %c0_12] : memref<1x96xf32, #tpu.memory_space<vmem>>, vector<1x96xf32>
    %17 = vector.broadcast %16 : vector<1x96xf32> to vector<64x96xf32>
    %18 = arith.addf %15, %17 : vector<64x96xf32>
    %c0_13 = arith.constant 0 : index
    %c0_14 = arith.constant 0 : index
    %19 = vector.load %arg8[%c0_13, %c0_14] : memref<64x192xbf16, #tpu.memory_space<vmem>>, vector<64x192xbf16>
    %c0_15 = arith.constant 0 : index
    %c0_16 = arith.constant 0 : index
    %c0_17 = arith.constant 0 : index
    %20 = vector.load %arg10[%c0_15, %c0_16, %c0_17] : memref<1x1x96xf32, #tpu.memory_space<vmem>>, vector<1x1x96xf32>
    %21 = vector.shape_cast %20 : vector<1x1x96xf32> to vector<1x96xf32>
    %22 = vector.shape_cast %21 : vector<1x96xf32> to vector<1x96xf32>
    %23 = vector.broadcast %22 : vector<1x96xf32> to vector<8x96xf32>
    %cst_18 = arith.constant 0.000000e+00 : f32
    %24 = vector.broadcast %cst_18 : f32 to vector<8x32xf32>
    %cst_19 = arith.constant 0.000000e+00 : f32
    %25 = vector.broadcast %cst_19 : f32 to vector<8x32xf32>
    %cst_20 = arith.constant 0.000000e+00 : f32
    %26 = vector.broadcast %cst_20 : f32 to vector<8x32xf32>
    %cst_21 = arith.constant 0.000000e+00 : f32
    %27 = vector.broadcast %cst_21 : f32 to vector<8x96xf32>
    %28 = vector.extract_strided_slice %18 {offsets = [0, 0], sizes = [8, 96], strides = [1, 1]} : vector<64x96xf32> to vector<8x96xf32>
    %29 = arith.addf %28, %27 : vector<8x96xf32>
    %30 = vector.extract_strided_slice %29 {offsets = [0, 0], sizes = [8, 64], strides = [1, 1]} : vector<8x96xf32> to vector<8x64xf32>
    %31 = arith.negf %30 : vector<8x64xf32>
    %32 = math.exp %31 : vector<8x64xf32>
    %cst_22 = arith.constant 1.000000e+00 : f32
    %33 = vector.broadcast %cst_22 : f32 to vector<8x64xf32>
    %34 = arith.addf %33, %32 : vector<8x64xf32>
    %35 = arith.divf %33, %34 : vector<8x64xf32>
    %36 = vector.extract_strided_slice %29 {offsets = [0, 64], sizes = [8, 32], strides = [1, 1]} : vector<8x96xf32> to vector<8x32xf32>
    %37 = math.tanh %36 : vector<8x32xf32>
    %38 = vector.extract_strided_slice %35 {offsets = [0, 0], sizes = [8, 32], strides = [1, 1]} : vector<8x64xf32> to vector<8x32xf32>
    %39 = arith.mulf %38, %25 : vector<8x32xf32>
    %40 = arith.mulf %11, %37 : vector<8x32xf32>
    %41 = arith.addf %39, %40 : vector<8x32xf32>
    %42 = vector.extract_strided_slice %35 {offsets = [0, 32], sizes = [8, 32], strides = [1, 1]} : vector<8x64xf32> to vector<8x32xf32>
    %43 = math.tanh %41 : vector<8x32xf32>
    %44 = arith.mulf %42, %43 : vector<8x32xf32>
    %45 = tpu.concatenate %44, %24 in 1 : vector<8x32xf32>, vector<8x32xf32> -> vector<8x64xf32>
    %46 = arith.truncf %45 : vector<8x64xf32> to vector<8x64xbf16>
    %cst_23 = arith.constant dense<0.000000e+00> : vector<8x192xf32>
    %47 = tpu.matmul %46, %19, %cst_23 {dimension_numbers = #tpu.dot_dimension_numbers<[1], [0], [0], [1], [0, 0, 1, 1], [], []>} : vector<8x64xbf16>, vector<64x192xbf16>, vector<8x192xf32> -> vector<8x192xf32>
    %48 = vector.extract_strided_slice %47 {offsets = [0, 96], sizes = [8, 96], strides = [1, 1]} : vector<8x192xf32> to vector<8x96xf32>
    %49 = vector.extract_strided_slice %47 {offsets = [0, 0], sizes = [8, 96], strides = [1, 1]} : vector<8x192xf32> to vector<8x96xf32>
    %50 = arith.addf %49, %23 : vector<8x96xf32>
    %51 = vector.extract_strided_slice %50 {offsets = [0, 0], sizes = [8, 64], strides = [1, 1]} : vector<8x96xf32> to vector<8x64xf32>
    %52 = arith.negf %51 : vector<8x64xf32>
    %53 = math.exp %52 : vector<8x64xf32>
    %cst_24 = arith.constant 1.000000e+00 : f32
    %54 = vector.broadcast %cst_24 : f32 to vector<8x64xf32>
    %55 = arith.addf %54, %53 : vector<8x64xf32>
    %56 = arith.divf %54, %55 : vector<8x64xf32>
    %57 = vector.extract_strided_slice %50 {offsets = [0, 64], sizes = [8, 32], strides = [1, 1]} : vector<8x96xf32> to vector<8x32xf32>
    %58 = math.tanh %57 : vector<8x32xf32>
    %59 = vector.extract_strided_slice %56 {offsets = [0, 0], sizes = [8, 32], strides = [1, 1]} : vector<8x64xf32> to vector<8x32xf32>
    %60 = arith.mulf %59, %26 : vector<8x32xf32>
    %61 = arith.mulf %12, %58 : vector<8x32xf32>
    %62 = arith.addf %60, %61 : vector<8x32xf32>
    %63 = vector.extract_strided_slice %56 {offsets = [0, 32], sizes = [8, 32], strides = [1, 1]} : vector<8x64xf32> to vector<8x32xf32>
    %64 = math.tanh %62 : vector<8x32xf32>
    %65 = arith.mulf %63, %64 : vector<8x32xf32>
    %66 = vector.extract_strided_slice %18 {offsets = [8, 0], sizes = [8, 96], strides = [1, 1]} : vector<64x96xf32> to vector<8x96xf32>
    %67 = arith.addf %66, %48 : vector<8x96xf32>
    %68 = vector.extract_strided_slice %67 {offsets = [0, 0], sizes = [8, 64], strides = [1, 1]} : vector<8x96xf32> to vector<8x64xf32>
    %69 = arith.negf %68 : vector<8x64xf32>
    %70 = math.exp %69 : vector<8x64xf32>
    %cst_25 = arith.constant 1.000000e+00 : f32
    %71 = vector.broadcast %cst_25 : f32 to vector<8x64xf32>
    %72 = arith.addf %71, %70 : vector<8x64xf32>
    %73 = arith.divf %71, %72 : vector<8x64xf32>
    %74 = vector.extract_strided_slice %67 {offsets = [0, 64], sizes = [8, 32], strides = [1, 1]} : vector<8x96xf32> to vector<8x32xf32>
    %75 = math.tanh %74 : vector<8x32xf32>
    %76 = vector.extract_strided_slice %73 {offsets = [0, 0], sizes = [8, 32], strides = [1, 1]} : vector<8x64xf32> to vector<8x32xf32>
    %77 = arith.mulf %76, %41 : vector<8x32xf32>
    %78 = arith.mulf %11, %75 : vector<8x32xf32>
    %79 = arith.addf %77, %78 : vector<8x32xf32>
    %80 = vector.extract_strided_slice %73 {offsets = [0, 32], sizes = [8, 32], strides = [1, 1]} : vector<8x64xf32> to vector<8x32xf32>
    %81 = math.tanh %79 : vector<8x32xf32>
    %82 = arith.mulf %80, %81 : vector<8x32xf32>
    %83 = tpu.concatenate %82, %65 in 1 : vector<8x32xf32>, vector<8x32xf32> -> vector<8x64xf32>
    %84 = arith.truncf %83 : vector<8x64xf32> to vector<8x64xbf16>
    %cst_26 = arith.constant dense<0.000000e+00> : vector<8x192xf32>
    %85 = tpu.matmul %84, %19, %cst_26 {dimension_numbers = #tpu.dot_dimension_numbers<[1], [0], [0], [1], [0, 0, 1, 1], [], []>} : vector<8x64xbf16>, vector<64x192xbf16>, vector<8x192xf32> -> vector<8x192xf32>
    %86 = vector.extract_strided_slice %85 {offsets = [0, 96], sizes = [8, 96], strides = [1, 1]} : vector<8x192xf32> to vector<8x96xf32>
    %87 = vector.extract_strided_slice %85 {offsets = [0, 0], sizes = [8, 96], strides = [1, 1]} : vector<8x192xf32> to vector<8x96xf32>
    %88 = arith.addf %87, %23 : vector<8x96xf32>
    %89 = vector.extract_strided_slice %88 {offsets = [0, 0], sizes = [8, 64], strides = [1, 1]} : vector<8x96xf32> to vector<8x64xf32>
    %90 = arith.negf %89 : vector<8x64xf32>
    %91 = math.exp %90 : vector<8x64xf32>
    %cst_27 = arith.constant 1.000000e+00 : f32
    %92 = vector.broadcast %cst_27 : f32 to vector<8x64xf32>
    %93 = arith.addf %92, %91 : vector<8x64xf32>
    %94 = arith.divf %92, %93 : vector<8x64xf32>
    %95 = vector.extract_strided_slice %88 {offsets = [0, 64], sizes = [8, 32], strides = [1, 1]} : vector<8x96xf32> to vector<8x32xf32>
    %96 = math.tanh %95 : vector<8x32xf32>
    %97 = vector.extract_strided_slice %94 {offsets = [0, 0], sizes = [8, 32], strides = [1, 1]} : vector<8x64xf32> to vector<8x32xf32>
    %98 = arith.mulf %97, %62 : vector<8x32xf32>
    %99 = arith.mulf %12, %96 : vector<8x32xf32>
    %100 = arith.addf %98, %99 : vector<8x32xf32>
    %101 = vector.extract_strided_slice %94 {offsets = [0, 32], sizes = [8, 32], strides = [1, 1]} : vector<8x64xf32> to vector<8x32xf32>
    %102 = math.tanh %100 : vector<8x32xf32>
    %103 = arith.mulf %101, %102 : vector<8x32xf32>
    %104 = vector.extract_strided_slice %18 {offsets = [16, 0], sizes = [8, 96], strides = [1, 1]} : vector<64x96xf32> to vector<8x96xf32>
    %105 = arith.addf %104, %86 : vector<8x96xf32>
    %106 = vector.extract_strided_slice %105 {offsets = [0, 0], sizes = [8, 64], strides = [1, 1]} : vector<8x96xf32> to vector<8x64xf32>
    %107 = arith.negf %106 : vector<8x64xf32>
    %108 = math.exp %107 : vector<8x64xf32>
    %cst_28 = arith.constant 1.000000e+00 : f32
    %109 = vector.broadcast %cst_28 : f32 to vector<8x64xf32>
    %110 = arith.addf %109, %108 : vector<8x64xf32>
    %111 = arith.divf %109, %110 : vector<8x64xf32>
    %112 = vector.extract_strided_slice %105 {offsets = [0, 64], sizes = [8, 32], strides = [1, 1]} : vector<8x96xf32> to vector<8x32xf32>
    %113 = math.tanh %112 : vector<8x32xf32>
    %114 = vector.extract_strided_slice %111 {offsets = [0, 0], sizes = [8, 32], strides = [1, 1]} : vector<8x64xf32> to vector<8x32xf32>
    %115 = arith.mulf %114, %79 : vector<8x32xf32>
    %116 = arith.mulf %11, %113 : vector<8x32xf32>
    %117 = arith.addf %115, %116 : vector<8x32xf32>
    %118 = vector.extract_strided_slice %111 {offsets = [0, 32], sizes = [8, 32], strides = [1, 1]} : vector<8x64xf32> to vector<8x32xf32>
    %119 = math.tanh %117 : vector<8x32xf32>
    %120 = arith.mulf %118, %119 : vector<8x32xf32>
    %121 = tpu.concatenate %120, %103 in 1 : vector<8x32xf32>, vector<8x32xf32> -> vector<8x64xf32>
    %122 = arith.truncf %121 : vector<8x64xf32> to vector<8x64xbf16>
    %cst_29 = arith.constant dense<0.000000e+00> : vector<8x192xf32>
    %123 = tpu.matmul %122, %19, %cst_29 {dimension_numbers = #tpu.dot_dimension_numbers<[1], [0], [0], [1], [0, 0, 1, 1], [], []>} : vector<8x64xbf16>, vector<64x192xbf16>, vector<8x192xf32> -> vector<8x192xf32>
    %124 = vector.extract_strided_slice %123 {offsets = [0, 96], sizes = [8, 96], strides = [1, 1]} : vector<8x192xf32> to vector<8x96xf32>
    %125 = vector.extract_strided_slice %123 {offsets = [0, 0], sizes = [8, 96], strides = [1, 1]} : vector<8x192xf32> to vector<8x96xf32>
    %126 = arith.addf %125, %23 : vector<8x96xf32>
    %127 = vector.extract_strided_slice %126 {offsets = [0, 0], sizes = [8, 64], strides = [1, 1]} : vector<8x96xf32> to vector<8x64xf32>
    %128 = arith.negf %127 : vector<8x64xf32>
    %129 = math.exp %128 : vector<8x64xf32>
    %cst_30 = arith.constant 1.000000e+00 : f32
    %130 = vector.broadcast %cst_30 : f32 to vector<8x64xf32>
    %131 = arith.addf %130, %129 : vector<8x64xf32>
    %132 = arith.divf %130, %131 : vector<8x64xf32>
    %133 = vector.extract_strided_slice %126 {offsets = [0, 64], sizes = [8, 32], strides = [1, 1]} : vector<8x96xf32> to vector<8x32xf32>
    %134 = math.tanh %133 : vector<8x32xf32>
    %135 = vector.extract_strided_slice %132 {offsets = [0, 0], sizes = [8, 32], strides = [1, 1]} : vector<8x64xf32> to vector<8x32xf32>
    %136 = arith.mulf %135, %100 : vector<8x32xf32>
    %137 = arith.mulf %12, %134 : vector<8x32xf32>
    %138 = arith.addf %136, %137 : vector<8x32xf32>
    %139 = vector.extract_strided_slice %132 {offsets = [0, 32], sizes = [8, 32], strides = [1, 1]} : vector<8x64xf32> to vector<8x32xf32>
    %140 = math.tanh %138 : vector<8x32xf32>
    %141 = arith.mulf %139, %140 : vector<8x32xf32>
    %142 = vector.extract_strided_slice %18 {offsets = [24, 0], sizes = [8, 96], strides = [1, 1]} : vector<64x96xf32> to vector<8x96xf32>
    %143 = arith.addf %142, %124 : vector<8x96xf32>
    %144 = vector.extract_strided_slice %143 {offsets = [0, 0], sizes = [8, 64], strides = [1, 1]} : vector<8x96xf32> to vector<8x64xf32>
    %145 = arith.negf %144 : vector<8x64xf32>
    %146 = math.exp %145 : vector<8x64xf32>
    %cst_31 = arith.constant 1.000000e+00 : f32
    %147 = vector.broadcast %cst_31 : f32 to vector<8x64xf32>
    %148 = arith.addf %147, %146 : vector<8x64xf32>
    %149 = arith.divf %147, %148 : vector<8x64xf32>
    %150 = vector.extract_strided_slice %143 {offsets = [0, 64], sizes = [8, 32], strides = [1, 1]} : vector<8x96xf32> to vector<8x32xf32>
    %151 = math.tanh %150 : vector<8x32xf32>
    %152 = vector.extract_strided_slice %149 {offsets = [0, 0], sizes = [8, 32], strides = [1, 1]} : vector<8x64xf32> to vector<8x32xf32>
    %153 = arith.mulf %152, %117 : vector<8x32xf32>
    %154 = arith.mulf %11, %151 : vector<8x32xf32>
    %155 = arith.addf %153, %154 : vector<8x32xf32>
    %156 = vector.extract_strided_slice %149 {offsets = [0, 32], sizes = [8, 32], strides = [1, 1]} : vector<8x64xf32> to vector<8x32xf32>
    %157 = math.tanh %155 : vector<8x32xf32>
    %158 = arith.mulf %156, %157 : vector<8x32xf32>
    %159 = tpu.concatenate %158, %141 in 1 : vector<8x32xf32>, vector<8x32xf32> -> vector<8x64xf32>
    %160 = arith.truncf %159 : vector<8x64xf32> to vector<8x64xbf16>
    %cst_32 = arith.constant dense<0.000000e+00> : vector<8x192xf32>
    %161 = tpu.matmul %160, %19, %cst_32 {dimension_numbers = #tpu.dot_dimension_numbers<[1], [0], [0], [1], [0, 0, 1, 1], [], []>} : vector<8x64xbf16>, vector<64x192xbf16>, vector<8x192xf32> -> vector<8x192xf32>
    %162 = vector.extract_strided_slice %161 {offsets = [0, 96], sizes = [8, 96], strides = [1, 1]} : vector<8x192xf32> to vector<8x96xf32>
    %163 = vector.extract_strided_slice %161 {offsets = [0, 0], sizes = [8, 96], strides = [1, 1]} : vector<8x192xf32> to vector<8x96xf32>
    %164 = arith.addf %163, %23 : vector<8x96xf32>
    %165 = vector.extract_strided_slice %164 {offsets = [0, 0], sizes = [8, 64], strides = [1, 1]} : vector<8x96xf32> to vector<8x64xf32>
    %166 = arith.negf %165 : vector<8x64xf32>
    %167 = math.exp %166 : vector<8x64xf32>
    %cst_33 = arith.constant 1.000000e+00 : f32
    %168 = vector.broadcast %cst_33 : f32 to vector<8x64xf32>
    %169 = arith.addf %168, %167 : vector<8x64xf32>
    %170 = arith.divf %168, %169 : vector<8x64xf32>
    %171 = vector.extract_strided_slice %164 {offsets = [0, 64], sizes = [8, 32], strides = [1, 1]} : vector<8x96xf32> to vector<8x32xf32>
    %172 = math.tanh %171 : vector<8x32xf32>
    %173 = vector.extract_strided_slice %170 {offsets = [0, 0], sizes = [8, 32], strides = [1, 1]} : vector<8x64xf32> to vector<8x32xf32>
    %174 = arith.mulf %173, %138 : vector<8x32xf32>
    %175 = arith.mulf %12, %172 : vector<8x32xf32>
    %176 = arith.addf %174, %175 : vector<8x32xf32>
    %177 = vector.extract_strided_slice %170 {offsets = [0, 32], sizes = [8, 32], strides = [1, 1]} : vector<8x64xf32> to vector<8x32xf32>
    %178 = math.tanh %176 : vector<8x32xf32>
    %179 = arith.mulf %177, %178 : vector<8x32xf32>
    %180 = vector.extract_strided_slice %18 {offsets = [32, 0], sizes = [8, 96], strides = [1, 1]} : vector<64x96xf32> to vector<8x96xf32>
    %181 = arith.addf %180, %162 : vector<8x96xf32>
    %182 = vector.extract_strided_slice %181 {offsets = [0, 0], sizes = [8, 64], strides = [1, 1]} : vector<8x96xf32> to vector<8x64xf32>
    %183 = arith.negf %182 : vector<8x64xf32>
    %184 = math.exp %183 : vector<8x64xf32>
    %cst_34 = arith.constant 1.000000e+00 : f32
    %185 = vector.broadcast %cst_34 : f32 to vector<8x64xf32>
    %186 = arith.addf %185, %184 : vector<8x64xf32>
    %187 = arith.divf %185, %186 : vector<8x64xf32>
    %188 = vector.extract_strided_slice %181 {offsets = [0, 64], sizes = [8, 32], strides = [1, 1]} : vector<8x96xf32> to vector<8x32xf32>
    %189 = math.tanh %188 : vector<8x32xf32>
    %190 = vector.extract_strided_slice %187 {offsets = [0, 0], sizes = [8, 32], strides = [1, 1]} : vector<8x64xf32> to vector<8x32xf32>
    %191 = arith.mulf %190, %155 : vector<8x32xf32>
    %192 = arith.mulf %11, %189 : vector<8x32xf32>
    %193 = arith.addf %191, %192 : vector<8x32xf32>
    %194 = vector.extract_strided_slice %187 {offsets = [0, 32], sizes = [8, 32], strides = [1, 1]} : vector<8x64xf32> to vector<8x32xf32>
    %195 = math.tanh %193 : vector<8x32xf32>
    %196 = arith.mulf %194, %195 : vector<8x32xf32>
    %197 = tpu.concatenate %196, %179 in 1 : vector<8x32xf32>, vector<8x32xf32> -> vector<8x64xf32>
    %198 = arith.truncf %197 : vector<8x64xf32> to vector<8x64xbf16>
    %cst_35 = arith.constant dense<0.000000e+00> : vector<8x192xf32>
    %199 = tpu.matmul %198, %19, %cst_35 {dimension_numbers = #tpu.dot_dimension_numbers<[1], [0], [0], [1], [0, 0, 1, 1], [], []>} : vector<8x64xbf16>, vector<64x192xbf16>, vector<8x192xf32> -> vector<8x192xf32>
    %200 = vector.extract_strided_slice %199 {offsets = [0, 96], sizes = [8, 96], strides = [1, 1]} : vector<8x192xf32> to vector<8x96xf32>
    %201 = vector.extract_strided_slice %199 {offsets = [0, 0], sizes = [8, 96], strides = [1, 1]} : vector<8x192xf32> to vector<8x96xf32>
    %202 = arith.addf %201, %23 : vector<8x96xf32>
    %203 = vector.extract_strided_slice %202 {offsets = [0, 0], sizes = [8, 64], strides = [1, 1]} : vector<8x96xf32> to vector<8x64xf32>
    %204 = arith.negf %203 : vector<8x64xf32>
    %205 = math.exp %204 : vector<8x64xf32>
    %cst_36 = arith.constant 1.000000e+00 : f32
    %206 = vector.broadcast %cst_36 : f32 to vector<8x64xf32>
    %207 = arith.addf %206, %205 : vector<8x64xf32>
    %208 = arith.divf %206, %207 : vector<8x64xf32>
    %209 = vector.extract_strided_slice %202 {offsets = [0, 64], sizes = [8, 32], strides = [1, 1]} : vector<8x96xf32> to vector<8x32xf32>
    %210 = math.tanh %209 : vector<8x32xf32>
    %211 = vector.extract_strided_slice %208 {offsets = [0, 0], sizes = [8, 32], strides = [1, 1]} : vector<8x64xf32> to vector<8x32xf32>
    %212 = arith.mulf %211, %176 : vector<8x32xf32>
    %213 = arith.mulf %12, %210 : vector<8x32xf32>
    %214 = arith.addf %212, %213 : vector<8x32xf32>
    %215 = vector.extract_strided_slice %208 {offsets = [0, 32], sizes = [8, 32], strides = [1, 1]} : vector<8x64xf32> to vector<8x32xf32>
    %216 = math.tanh %214 : vector<8x32xf32>
    %217 = arith.mulf %215, %216 : vector<8x32xf32>
    %218 = vector.extract_strided_slice %18 {offsets = [40, 0], sizes = [8, 96], strides = [1, 1]} : vector<64x96xf32> to vector<8x96xf32>
    %219 = arith.addf %218, %200 : vector<8x96xf32>
    %220 = vector.extract_strided_slice %219 {offsets = [0, 0], sizes = [8, 64], strides = [1, 1]} : vector<8x96xf32> to vector<8x64xf32>
    %221 = arith.negf %220 : vector<8x64xf32>
    %222 = math.exp %221 : vector<8x64xf32>
    %cst_37 = arith.constant 1.000000e+00 : f32
    %223 = vector.broadcast %cst_37 : f32 to vector<8x64xf32>
    %224 = arith.addf %223, %222 : vector<8x64xf32>
    %225 = arith.divf %223, %224 : vector<8x64xf32>
    %226 = vector.extract_strided_slice %219 {offsets = [0, 64], sizes = [8, 32], strides = [1, 1]} : vector<8x96xf32> to vector<8x32xf32>
    %227 = math.tanh %226 : vector<8x32xf32>
    %228 = vector.extract_strided_slice %225 {offsets = [0, 0], sizes = [8, 32], strides = [1, 1]} : vector<8x64xf32> to vector<8x32xf32>
    %229 = arith.mulf %228, %193 : vector<8x32xf32>
    %230 = arith.mulf %11, %227 : vector<8x32xf32>
    %231 = arith.addf %229, %230 : vector<8x32xf32>
    %232 = vector.extract_strided_slice %225 {offsets = [0, 32], sizes = [8, 32], strides = [1, 1]} : vector<8x64xf32> to vector<8x32xf32>
    %233 = math.tanh %231 : vector<8x32xf32>
    %234 = arith.mulf %232, %233 : vector<8x32xf32>
    %235 = tpu.concatenate %234, %217 in 1 : vector<8x32xf32>, vector<8x32xf32> -> vector<8x64xf32>
    %236 = arith.truncf %235 : vector<8x64xf32> to vector<8x64xbf16>
    %cst_38 = arith.constant dense<0.000000e+00> : vector<8x192xf32>
    %237 = tpu.matmul %236, %19, %cst_38 {dimension_numbers = #tpu.dot_dimension_numbers<[1], [0], [0], [1], [0, 0, 1, 1], [], []>} : vector<8x64xbf16>, vector<64x192xbf16>, vector<8x192xf32> -> vector<8x192xf32>
    %238 = vector.extract_strided_slice %237 {offsets = [0, 96], sizes = [8, 96], strides = [1, 1]} : vector<8x192xf32> to vector<8x96xf32>
    %239 = vector.extract_strided_slice %237 {offsets = [0, 0], sizes = [8, 96], strides = [1, 1]} : vector<8x192xf32> to vector<8x96xf32>
    %240 = arith.addf %239, %23 : vector<8x96xf32>
    %241 = vector.extract_strided_slice %240 {offsets = [0, 0], sizes = [8, 64], strides = [1, 1]} : vector<8x96xf32> to vector<8x64xf32>
    %242 = arith.negf %241 : vector<8x64xf32>
    %243 = math.exp %242 : vector<8x64xf32>
    %cst_39 = arith.constant 1.000000e+00 : f32
    %244 = vector.broadcast %cst_39 : f32 to vector<8x64xf32>
    %245 = arith.addf %244, %243 : vector<8x64xf32>
    %246 = arith.divf %244, %245 : vector<8x64xf32>
    %247 = vector.extract_strided_slice %240 {offsets = [0, 64], sizes = [8, 32], strides = [1, 1]} : vector<8x96xf32> to vector<8x32xf32>
    %248 = math.tanh %247 : vector<8x32xf32>
    %249 = vector.extract_strided_slice %246 {offsets = [0, 0], sizes = [8, 32], strides = [1, 1]} : vector<8x64xf32> to vector<8x32xf32>
    %250 = arith.mulf %249, %214 : vector<8x32xf32>
    %251 = arith.mulf %12, %248 : vector<8x32xf32>
    %252 = arith.addf %250, %251 : vector<8x32xf32>
    %253 = vector.extract_strided_slice %246 {offsets = [0, 32], sizes = [8, 32], strides = [1, 1]} : vector<8x64xf32> to vector<8x32xf32>
    %254 = math.tanh %252 : vector<8x32xf32>
    %255 = arith.mulf %253, %254 : vector<8x32xf32>
    %256 = vector.extract_strided_slice %18 {offsets = [48, 0], sizes = [8, 96], strides = [1, 1]} : vector<64x96xf32> to vector<8x96xf32>
    %257 = arith.addf %256, %238 : vector<8x96xf32>
    %258 = vector.extract_strided_slice %257 {offsets = [0, 0], sizes = [8, 64], strides = [1, 1]} : vector<8x96xf32> to vector<8x64xf32>
    %259 = arith.negf %258 : vector<8x64xf32>
    %260 = math.exp %259 : vector<8x64xf32>
    %cst_40 = arith.constant 1.000000e+00 : f32
    %261 = vector.broadcast %cst_40 : f32 to vector<8x64xf32>
    %262 = arith.addf %261, %260 : vector<8x64xf32>
    %263 = arith.divf %261, %262 : vector<8x64xf32>
    %264 = vector.extract_strided_slice %257 {offsets = [0, 64], sizes = [8, 32], strides = [1, 1]} : vector<8x96xf32> to vector<8x32xf32>
    %265 = math.tanh %264 : vector<8x32xf32>
    %266 = vector.extract_strided_slice %263 {offsets = [0, 0], sizes = [8, 32], strides = [1, 1]} : vector<8x64xf32> to vector<8x32xf32>
    %267 = arith.mulf %266, %231 : vector<8x32xf32>
    %268 = arith.mulf %11, %265 : vector<8x32xf32>
    %269 = arith.addf %267, %268 : vector<8x32xf32>
    %270 = vector.extract_strided_slice %263 {offsets = [0, 32], sizes = [8, 32], strides = [1, 1]} : vector<8x64xf32> to vector<8x32xf32>
    %271 = math.tanh %269 : vector<8x32xf32>
    %272 = arith.mulf %270, %271 : vector<8x32xf32>
    %273 = tpu.concatenate %272, %255 in 1 : vector<8x32xf32>, vector<8x32xf32> -> vector<8x64xf32>
    %274 = arith.truncf %273 : vector<8x64xf32> to vector<8x64xbf16>
    %cst_41 = arith.constant dense<0.000000e+00> : vector<8x192xf32>
    %275 = tpu.matmul %274, %19, %cst_41 {dimension_numbers = #tpu.dot_dimension_numbers<[1], [0], [0], [1], [0, 0, 1, 1], [], []>} : vector<8x64xbf16>, vector<64x192xbf16>, vector<8x192xf32> -> vector<8x192xf32>
    %276 = vector.extract_strided_slice %275 {offsets = [0, 96], sizes = [8, 96], strides = [1, 1]} : vector<8x192xf32> to vector<8x96xf32>
    %277 = vector.extract_strided_slice %275 {offsets = [0, 0], sizes = [8, 96], strides = [1, 1]} : vector<8x192xf32> to vector<8x96xf32>
    %278 = arith.addf %277, %23 : vector<8x96xf32>
    %279 = vector.extract_strided_slice %278 {offsets = [0, 0], sizes = [8, 64], strides = [1, 1]} : vector<8x96xf32> to vector<8x64xf32>
    %280 = arith.negf %279 : vector<8x64xf32>
    %281 = math.exp %280 : vector<8x64xf32>
    %cst_42 = arith.constant 1.000000e+00 : f32
    %282 = vector.broadcast %cst_42 : f32 to vector<8x64xf32>
    %283 = arith.addf %282, %281 : vector<8x64xf32>
    %284 = arith.divf %282, %283 : vector<8x64xf32>
    %285 = vector.extract_strided_slice %278 {offsets = [0, 64], sizes = [8, 32], strides = [1, 1]} : vector<8x96xf32> to vector<8x32xf32>
    %286 = math.tanh %285 : vector<8x32xf32>
    %287 = vector.extract_strided_slice %284 {offsets = [0, 0], sizes = [8, 32], strides = [1, 1]} : vector<8x64xf32> to vector<8x32xf32>
    %288 = arith.mulf %287, %252 : vector<8x32xf32>
    %289 = arith.mulf %12, %286 : vector<8x32xf32>
    %290 = arith.addf %288, %289 : vector<8x32xf32>
    %291 = vector.extract_strided_slice %284 {offsets = [0, 32], sizes = [8, 32], strides = [1, 1]} : vector<8x64xf32> to vector<8x32xf32>
    %292 = math.tanh %290 : vector<8x32xf32>
    %293 = arith.mulf %291, %292 : vector<8x32xf32>
    %294 = vector.extract_strided_slice %18 {offsets = [56, 0], sizes = [8, 96], strides = [1, 1]} : vector<64x96xf32> to vector<8x96xf32>
    %295 = arith.addf %294, %276 : vector<8x96xf32>
    %296 = vector.extract_strided_slice %295 {offsets = [0, 0], sizes = [8, 64], strides = [1, 1]} : vector<8x96xf32> to vector<8x64xf32>
    %297 = arith.negf %296 : vector<8x64xf32>
    %298 = math.exp %297 : vector<8x64xf32>
    %cst_43 = arith.constant 1.000000e+00 : f32
    %299 = vector.broadcast %cst_43 : f32 to vector<8x64xf32>
    %300 = arith.addf %299, %298 : vector<8x64xf32>
    %301 = arith.divf %299, %300 : vector<8x64xf32>
    %302 = vector.extract_strided_slice %295 {offsets = [0, 64], sizes = [8, 32], strides = [1, 1]} : vector<8x96xf32> to vector<8x32xf32>
    %303 = math.tanh %302 : vector<8x32xf32>
    %304 = vector.extract_strided_slice %301 {offsets = [0, 0], sizes = [8, 32], strides = [1, 1]} : vector<8x64xf32> to vector<8x32xf32>
    %305 = arith.mulf %304, %269 : vector<8x32xf32>
    %306 = arith.mulf %11, %303 : vector<8x32xf32>
    %307 = arith.addf %305, %306 : vector<8x32xf32>
    %308 = vector.extract_strided_slice %301 {offsets = [0, 32], sizes = [8, 32], strides = [1, 1]} : vector<8x64xf32> to vector<8x32xf32>
    %309 = math.tanh %307 : vector<8x32xf32>
    %310 = arith.mulf %308, %309 : vector<8x32xf32>
    %311 = tpu.concatenate %310, %293 in 1 : vector<8x32xf32>, vector<8x32xf32> -> vector<8x64xf32>
    %312 = arith.truncf %311 : vector<8x64xf32> to vector<8x64xbf16>
    %cst_44 = arith.constant dense<0.000000e+00> : vector<8x192xf32>
    %313 = tpu.matmul %312, %19, %cst_44 {dimension_numbers = #tpu.dot_dimension_numbers<[1], [0], [0], [1], [0, 0, 1, 1], [], []>} : vector<8x64xbf16>, vector<64x192xbf16>, vector<8x192xf32> -> vector<8x192xf32>
    %314 = vector.extract_strided_slice %313 {offsets = [0, 0], sizes = [8, 96], strides = [1, 1]} : vector<8x192xf32> to vector<8x96xf32>
    %315 = arith.addf %314, %23 : vector<8x96xf32>
    %316 = vector.extract_strided_slice %315 {offsets = [0, 0], sizes = [8, 64], strides = [1, 1]} : vector<8x96xf32> to vector<8x64xf32>
    %317 = arith.negf %316 : vector<8x64xf32>
    %318 = math.exp %317 : vector<8x64xf32>
    %cst_45 = arith.constant 1.000000e+00 : f32
    %319 = vector.broadcast %cst_45 : f32 to vector<8x64xf32>
    %320 = arith.addf %319, %318 : vector<8x64xf32>
    %321 = arith.divf %319, %320 : vector<8x64xf32>
    %322 = vector.extract_strided_slice %315 {offsets = [0, 64], sizes = [8, 32], strides = [1, 1]} : vector<8x96xf32> to vector<8x32xf32>
    %323 = math.tanh %322 : vector<8x32xf32>
    %324 = vector.extract_strided_slice %321 {offsets = [0, 0], sizes = [8, 32], strides = [1, 1]} : vector<8x64xf32> to vector<8x32xf32>
    %325 = arith.mulf %324, %290 : vector<8x32xf32>
    %326 = arith.mulf %12, %323 : vector<8x32xf32>
    %327 = arith.addf %325, %326 : vector<8x32xf32>
    %328 = vector.extract_strided_slice %321 {offsets = [0, 32], sizes = [8, 32], strides = [1, 1]} : vector<8x64xf32> to vector<8x32xf32>
    %329 = math.tanh %327 : vector<8x32xf32>
    %330 = arith.mulf %328, %329 : vector<8x32xf32>
    %c0_46 = arith.constant 0 : index
    %c0_47 = arith.constant 0 : index
    %331 = vector.load %arg2[%c0_46, %c0_47] : memref<8x8xf32, #tpu.memory_space<vmem>>, vector<8x8xf32>
    %332 = tpu.concatenate %330, %331 in 1 : vector<8x32xf32>, vector<8x8xf32> -> vector<8x40xf32>
    %c0_48 = arith.constant 0 : index
    %c0_49 = arith.constant 0 : index
    %333 = vector.load %arg11[%c0_48, %c0_49] : memref<40x64xf32, #tpu.memory_space<vmem>>, vector<40x64xf32>
    %cst_50 = arith.constant dense<0.000000e+00> : vector<8x64xf32>
    %334 = tpu.matmul %332, %333, %cst_50 {dimension_numbers = #tpu.dot_dimension_numbers<[1], [0], [0], [1], [0, 0, 1, 1], [], []>} : vector<8x40xf32>, vector<40x64xf32>, vector<8x64xf32> -> vector<8x64xf32>
    %c0_51 = arith.constant 0 : index
    %c0_52 = arith.constant 0 : index
    %335 = vector.load %arg12[%c0_51, %c0_52] : memref<1x64xf32, #tpu.memory_space<vmem>>, vector<1x64xf32>
    %336 = vector.broadcast %335 : vector<1x64xf32> to vector<8x64xf32>
    %337 = arith.addf %334, %336 : vector<8x64xf32>
    %cst_53 = arith.constant 0.000000e+00 : f32
    %338 = vector.broadcast %cst_53 : f32 to vector<8x64xf32>
    %339 = arith.maximumf %337, %338 : vector<8x64xf32>
    %c0_54 = arith.constant 0 : index
    %c0_55 = arith.constant 0 : index
    %340 = vector.load %arg13[%c0_54, %c0_55] : memref<64x4xf32, #tpu.memory_space<vmem>>, vector<64x4xf32>
    %cst_56 = arith.constant dense<0.000000e+00> : vector<8x4xf32>
    %341 = tpu.matmul %339, %340, %cst_56 {dimension_numbers = #tpu.dot_dimension_numbers<[1], [0], [0], [1], [0, 0, 1, 1], [], []>} : vector<8x64xf32>, vector<64x4xf32>, vector<8x4xf32> -> vector<8x4xf32>
    %c0_57 = arith.constant 0 : index
    %c0_58 = arith.constant 0 : index
    %342 = vector.load %arg14[%c0_57, %c0_58] : memref<1x4xf32, #tpu.memory_space<vmem>>, vector<1x4xf32>
    %343 = vector.broadcast %342 : vector<1x4xf32> to vector<8x4xf32>
    %344 = arith.addf %341, %343 : vector<8x4xf32>
    %c0_59 = arith.constant 0 : index
    %c0_60 = arith.constant 0 : index
    %345 = vector.load %arg15[%c0_59, %c0_60] : memref<8x4xf32, #tpu.memory_space<vmem>>, vector<8x4xf32>
    tpu.vector_store %arg15[%c0_59, %c0_60], %344 {strides = array<i32>} : memref<8x4xf32, #tpu.memory_space<vmem>>, vector<8x4xf32>,
    return
  }
}

</mosaic_0001>

<llo_original>
// kernel: tpu_custom_call.1
$region0: #{tpu_custom_call.1}
  #allocation0 [shape = 'u32[]', space=smem, size = 0x4, offset = 0x4, fixed_abs, tag = 'smem constant byte address 0x4 - core index']
  #allocation1 [shape = 'u32[72,128]{1,0:T(1,128)}', space=vmem, size = 0x9000, scoped, tag = 'internal scratch']
  %s0 = inlined_call_operand.vmem [shape: f32[64,8], index: 0, kind: input, shape index: {}]
  %s1 = inlined_call_operand.hbm [shape: f32[8,6], index: 1, kind: input, shape index: {}]
  %s2 = inlined_call_operand.hbm [shape: f32[8,8], index: 2, kind: input, shape index: {}]
  %s3 = inlined_call_operand.hbm [shape: f32[6,64], index: 3, kind: input, shape index: {}]
  %s4 = inlined_call_operand.vmem [shape: f32[1,64], index: 4, kind: input, shape index: {}]
  %s5 = inlined_call_operand.hbm [shape: f32[8,96], index: 5, kind: input, shape index: {}]
  %s6 = inlined_call_operand.vmem [shape: f32[1,96], index: 6, kind: input, shape index: {}]
  %s7 = inlined_call_operand.hbm [shape: bf16[32,96], index: 7, kind: input, shape index: {}]
  %s8 = inlined_call_operand.vmem [shape: bf16[64,192], index: 8, kind: input, shape index: {}]
  %s9 = inlined_call_operand.vmem [shape: bf16[1,64,96], index: 9, kind: input, shape index: {}]
  %s10 = inlined_call_operand.vmem [shape: f32[1,1,96], index: 10, kind: input, shape index: {}]
  %s11 = inlined_call_operand.vmem [shape: f32[40,64], index: 11, kind: input, shape index: {}]
  %s12 = inlined_call_operand.vmem [shape: f32[1,64], index: 12, kind: input, shape index: {}]
  %s13 = inlined_call_operand.vmem [shape: f32[64,4], index: 13, kind: input, shape index: {}]
  %s14 = inlined_call_operand.vmem [shape: f32[1,4], index: 14, kind: input, shape index: {}]
  %s15 = inlined_call_operand.vmem [shape: f32[8,4], index: 15, kind: output, shape index: {}]
  %s16 = sld [smem:[#allocation0]]
  $region90: #{tpu_custom_call.1} parent=0
    _
  %s18 = ssub.s32 1, %s16
  %s19 = scalar_select 0, %s18, %s16
  $region1: #{tpu_custom_call.1} parent=0
    #allocation2 [shape = 'u8[4096]{0}', space=vmem, size = 0x1000, scoped, tag = 'input window, operand 1, single buffered']
    #allocation3 [shape = 's32[1]{0}', space=sflag, size = 0x4, scoped, tag = 'scoped memory for tpu_custom_call.1']
    #allocation4 [shape = 'u8[4096]{0}', space=vmem, size = 0x1000, scoped, tag = 'input window, operand 2, single buffered']
    #allocation5 [shape = 's32[1]{0}', space=sflag, size = 0x4, scoped, tag = 'scoped memory for tpu_custom_call.1']
    #allocation6 [shape = 'u8[4096]{0}', space=vmem, size = 0x1000, scoped, tag = 'input window, operand 3, single buffered']
    #allocation7 [shape = 'u8[4096]{0}', space=vmem, size = 0x1000, scoped, tag = 'input window, operand 5, single buffered']
    #allocation8 [shape = 's32[1]{0}', space=sflag, size = 0x4, scoped, tag = 'scoped memory for tpu_custom_call.1']
    #allocation9 [shape = 'u8[8192]{0}', space=vmem, size = 0x2000, scoped, tag = 'input window, operand 7, single buffered']
    %20 = vsyncpa [#allocation3], 0
    %21 = vsyncpa [#allocation5], 0
    %22 = vsyncpa [#allocation8], 0
    // Predicated region
    $region2: #{tpu_custom_call.1} parent=1 // pred_check
      _
    $region3: #{tpu_custom_call.1} parent=1 // pred_check_branch
      %24 = sbr.rel (0) target = $region5
    $region4: #{tpu_custom_call.1} parent=1 // pred_region
      _
    $region5: #{tpu_custom_call.1} parent=1 // pred_fallthru
      _
    // Predicated region
    $region6: #{tpu_custom_call.1} parent=1 // pred_check
      _
    $region7: #{tpu_custom_call.1} parent=1 // pred_check_branch
      %26 = sbr.rel (0) target = $region9
    $region8: #{tpu_custom_call.1} parent=1 // pred_region
      %28 = vsyncadd [#allocation3], 0
      %s30 = sshll.u32 %s1, 4
      %s31 = int_to_ptr.hbm [resolvable:$true] %s30
      %s32 = sshll.u32 [#allocation2], 4
      %s33 = int_to_ptr.vmem [resolvable:$true] %s32
      %35 = dma.hbm_to_vmem [thread:$0]  %s31, 128, %s33, [#allocation3]
    $region9: #{tpu_custom_call.1} parent=1 // pred_fallthru
      _
    // Predicated region
    $region10: #{tpu_custom_call.1} parent=1 // pred_check
      _
    $region11: #{tpu_custom_call.1} parent=1 // pred_check_branch
      %37 = sbr.rel (0) target = $region13
    $region12: #{tpu_custom_call.1} parent=1 // pred_region
      %39 = vsyncadd [#allocation5], 0
      %s41 = sshll.u32 %s2, 4
      %s42 = int_to_ptr.hbm [resolvable:$true] %s41
      %s43 = sshll.u32 [#allocation4], 4
      %s44 = int_to_ptr.vmem [resolvable:$true] %s43
      %46 = dma.hbm_to_vmem [thread:$0]  %s42, 128, %s44, [#allocation5]
    $region13: #{tpu_custom_call.1} parent=1 // pred_fallthru
      _
    // Predicated region
    $region14: #{tpu_custom_call.1} parent=1 // pred_check
      _
    $region15: #{tpu_custom_call.1} parent=1 // pred_check_branch
      %48 = sbr.rel (0) target = $region17
    $region16: #{tpu_custom_call.1} parent=1 // pred_region
      %50 = vsyncadd [#allocation5], 0
      %s52 = sshll.u32 %s3, 4
      %s53 = int_to_ptr.hbm [resolvable:$true] %s52
      %s54 = sshll.u32 [#allocation6], 4
      %s55 = int_to_ptr.vmem [resolvable:$true] %s54
      %57 = dma.hbm_to_vmem [thread:$0]  %s53, 128, %s55, [#allocation5]
    $region17: #{tpu_custom_call.1} parent=1 // pred_fallthru
      _
    // Predicated region
    $region18: #{tpu_custom_call.1} parent=1 // pred_check
      _
    $region19: #{tpu_custom_call.1} parent=1 // pred_check_branch
      %59 = sbr.rel (0) target = $region21
    $region20: #{tpu_custom_call.1} parent=1 // pred_region
      _
    $region21: #{tpu_custom_call.1} parent=1 // pred_fallthru
      _
    // Predicated region
    $region22: #{tpu_custom_call.1} parent=1 // pred_check
      _
    $region23: #{tpu_custom_call.1} parent=1 // pred_check_branch
      %61 = sbr.rel (0) target = $region25
    $region24: #{tpu_custom_call.1} parent=1 // pred_region
      %63 = vsyncadd [#allocation8], 0
      %s65 = sshll.u32 %s5, 4
      %s66 = int_to_ptr.hbm [resolvable:$true] %s65
      %s67 = sshll.u32 [#allocation7], 4
      %s68 = int_to_ptr.vmem [resolvable:$true] %s67
      %70 = dma.hbm_to_vmem [thread:$0]  %s66, 128, %s68, [#allocation8]
    $region25: #{tpu_custom_call.1} parent=1 // pred_fallthru
      _
    // Predicated region
    $region26: #{tpu_custom_call.1} parent=1 // pred_check
      _
    $region27: #{tpu_custom_call.1} parent=1 // pred_check_branch
      %72 = sbr.rel (0) target = $region29
    $region28: #{tpu_custom_call.1} parent=1 // pred_region
      _
    $region29: #{tpu_custom_call.1} parent=1 // pred_fallthru
      _
    // Predicated region
    $region30: #{tpu_custom_call.1} parent=1 // pred_check
      _
    $region31: #{tpu_custom_call.1} parent=1 // pred_check_branch
      %74 = sbr.rel (0) target = $region33
    $region32: #{tpu_custom_call.1} parent=1 // pred_region
      %76 = vsyncadd [#allocation8], 0
      %s77 = sshll.u32 %s7, 4
      %s78 = int_to_ptr.hbm [resolvable:$true] %s77
      %s79 = sshll.u32 [#allocation9], 4
      %s80 = int_to_ptr.vmem [resolvable:$true] %s79
      %85 = dma.hbm_to_vmem [thread:$0]  %s78, 256, %s80, [#allocation8], 64, 64, 4
    $region33: #{tpu_custom_call.1} parent=1 // pred_fallthru
      _
    // Predicated region
    $region34: #{tpu_custom_call.1} parent=1 // pred_check
      _
    $region35: #{tpu_custom_call.1} parent=1 // pred_check_branch
      %87 = sbr.rel (0) target = $region37
    $region36: #{tpu_custom_call.1} parent=1 // pred_region
      _
    $region37: #{tpu_custom_call.1} parent=1 // pred_fallthru
      _
    // Predicated region
    $region38: #{tpu_custom_call.1} parent=1 // pred_check
      _
    $region39: #{tpu_custom_call.1} parent=1 // pred_check_branch
      %89 = sbr.rel (0) target = $region41
    $region40: #{tpu_custom_call.1} parent=1 // pred_region
      _
    $region41: #{tpu_custom_call.1} parent=1 // pred_fallthru
      _
    // Predicated region
    $region42: #{tpu_custom_call.1} parent=1 // pred_check
      _
    $region43: #{tpu_custom_call.1} parent=1 // pred_check_branch
      %91 = sbr.rel (0) target = $region45
    $region44: #{tpu_custom_call.1} parent=1 // pred_region
      _
    $region45: #{tpu_custom_call.1} parent=1 // pred_fallthru
      _
    // Predicated region
    $region46: #{tpu_custom_call.1} parent=1 // pred_check
      _
    $region47: #{tpu_custom_call.1} parent=1 // pred_check_branch
      %93 = sbr.rel (0) target = $region49
    $region48: #{tpu_custom_call.1} parent=1 // pred_region
      _
    $region49: #{tpu_custom_call.1} parent=1 // pred_fallthru
      _
    // Predicated region
    $region50: #{tpu_custom_call.1} parent=1 // pred_check
      _
    $region51: #{tpu_custom_call.1} parent=1 // pred_check_branch
      %95 = sbr.rel (0) target = $region53
    $region52: #{tpu_custom_call.1} parent=1 // pred_region
      _
    $region53: #{tpu_custom_call.1} parent=1 // pred_fallthru
      _
    // Predicated region
    $region54: #{tpu_custom_call.1} parent=1 // pred_check
      _
    $region55: #{tpu_custom_call.1} parent=1 // pred_check_branch
      %97 = sbr.rel (0) target = $region57
    $region56: #{tpu_custom_call.1} parent=1 // pred_region
      _
    $region57: #{tpu_custom_call.1} parent=1 // pred_fallthru
      _
    // Predicated region
    $region58: #{tpu_custom_call.1} parent=1 // pred_check
      _
    $region59: #{tpu_custom_call.1} parent=1 // pred_check_branch
      %99 = sbr.rel (0) target = $region61
    $region60: #{tpu_custom_call.1} parent=1 // pred_region
      _
    $region61: #{tpu_custom_call.1} parent=1 // pred_fallthru
      _
    // Predicated region
    $region62: #{tpu_custom_call.1} parent=1 // pred_check
      _
    $region63: #{tpu_custom_call.1} parent=1 // pred_check_branch
      %101 = sbr.rel (0) target = $region65
    $region64: #{tpu_custom_call.1} parent=1 // pred_region
      %103 = dma.done [#allocation3], 128
    $region65: #{tpu_custom_call.1} parent=1 // pred_fallthru
      _
    // Predicated region
    $region66: #{tpu_custom_call.1} parent=1 // pred_check
      _
    $region67: #{tpu_custom_call.1} parent=1 // pred_check_branch
      %105 = sbr.rel (0) target = $region69
    $region68: #{tpu_custom_call.1} parent=1 // pred_region
      %107 = dma.done [#allocation5], 128
    $region69: #{tpu_custom_call.1} parent=1 // pred_fallthru
      _
    // Predicated region
    $region70: #{tpu_custom_call.1} parent=1 // pred_check
      _
    $region71: #{tpu_custom_call.1} parent=1 // pred_check_branch
      %109 = sbr.rel (0) target = $region73
    $region72: #{tpu_custom_call.1} parent=1 // pred_region
      %111 = dma.done [#allocation5], 128
    $region73: #{tpu_custom_call.1} parent=1 // pred_fallthru
      _
    // Predicated region
    $region74: #{tpu_custom_call.1} parent=1 // pred_check
      _
    $region75: #{tpu_custom_call.1} parent=1 // pred_check_branch
      %113 = sbr.rel (0) target = $region77
    $region76: #{tpu_custom_call.1} parent=1 // pred_region
      %115 = dma.done [#allocation8], 128
    $region77: #{tpu_custom_call.1} parent=1 // pred_fallthru
      _
    // Predicated region
    $region78: #{tpu_custom_call.1} parent=1 // pred_check
      _
    $region79: #{tpu_custom_call.1} parent=1 // pred_check_branch
      %117 = sbr.rel (0) target = $region81
    $region80: #{tpu_custom_call.1} parent=1 // pred_region
      %119 = dma.done [#allocation8], 256
    $region81: #{tpu_custom_call.1} parent=1 // pred_fallthru
      _
    %v121 = vld [vmem:[#allocation2] sm:$0xff]
    %v122 = vld [vmem:[#allocation6] sm:$0x3f]
    %v123 = vld [vmem:[%s4] sm:$0x1]
    %v125 = vperm.slane %v123, 0
    %vm127 = vcmask 48128
    %v129 = vsel %vm127, %v121, 0
    %vm131 = vcmask 1045504
    %v133 = vsel %vm131, %v122, 0
    %135 = vmatpush.msra.mxu0 0.0
    %136 = vmatpush.msra.mxu0 0.0
    %137 = vmatpush.msra.mxu0 0.0
    %138 = vmatpush.msra.mxu0 0.0
    %139 = vmatpush.msra.mxu0 0.0
    %140 = vmatpush.msra.mxu0 0.0
    %141 = vmatpush.msra.mxu0 0.0
    %142 = vmatpush.msra.mxu0 0.0
    %143 = vmatpush.msra.mxu0 0.0
    %144 = vmatpush.msra.mxu0 0.0
    %145 = vmatpush.msra.mxu0 0.0
    %146 = vmatpush.msra.mxu0 0.0
    %147 = vmatpush.msra.mxu0 0.0
    %148 = vmatpush.msra.mxu0 0.0
    %149 = vmatpush.msra.mxu0 0.0
    %150 = vmatpush.msra.mxu0 %v133
    %151 = vmatmul.f32.gmra.mxu0 %v129
    %v152 = vpop.f32.mrf.mxu0
    %v153 = vadd.f32 %v125, %v152
    %154 = vdwg.mxu0
    %v155 = vxor.u32 %v153, 2147483648
    %v156 = vmul.f32 %v155, 1.442695
    %v157 = vpow.pop %v156
    %v158 = vadd.f32 %v157, 1.0
    %v159 = vrcp.pop %v158
    %v160 = vmul.f32 %v158, %v159
    %v161 = vsub.f32 1.0, %v160
    %v162 = vmul.f32 %v159, %v161
    %v163 = vadd.f32 %v159, %v162
    %vm164 = vweird.f32 %v158
    %vm165 = vweird.f32 %v159
    %vm166 = vmor %vm164, %vm165
    %v167 = vsel %vm166, %v159, %v163
    %v168 = vand.u32 2147483647, %v158
    %vm169 = vcmp.eq.f32.partialorder %v168, 8.507059e+37
    %v170 = vand.u32 %v158, 2147483648
    %v171 = vor.u32 1.1754944e-38, %v170
    %v172 = vsel %vm169, %v171, %v167
    %v173 = vmul.f32 1.0, %v172
    %v174 = vld [vmem:[%s0] sm:$0xff]
    %v175 = vld [vmem:[%s0 + $0x8] sm:$0xff]
    %v176 = vld [vmem:[%s0 + $0x10] sm:$0xff]
    %v177 = vld [vmem:[%s0 + $0x18] sm:$0xff]
    %v178 = vld [vmem:[%s0 + $0x20] sm:$0xff]
    %v179 = vld [vmem:[%s0 + $0x28] sm:$0xff]
    %v180 = vld [vmem:[%s0 + $0x30] sm:$0xff]
    %v181 = vld [vmem:[%s0 + $0x38] sm:$0xff]
    %v182 = vld [vmem:[#allocation7] sm:$0xff]
    %v183 = vld [vmem:[%s6] sm:$0x1]
    %v185 = vperm.slane %v183, 0
    %vm187 = vcmask 64512
    %v189 = vsel %vm187, %v174, 0
    %v192 = vsel %vm187, %v175, 0
    %v195 = vsel %vm187, %v176, 0
    %v198 = vsel %vm187, %v177, 0
    %v201 = vsel %vm187, %v178, 0
    %v204 = vsel %vm187, %v179, 0
    %v207 = vsel %vm187, %v180, 0
    %v210 = vsel %vm187, %v181, 0
    %212 = vmatpush.msra.mxu0 0.0
    %213 = vmatpush.msra.mxu0 0.0
    %214 = vmatpush.msra.mxu0 0.0
    %215 = vmatpush.msra.mxu0 0.0
    %216 = vmatpush.msra.mxu0 0.0
    %217 = vmatpush.msra.mxu0 0.0
    %218 = vmatpush.msra.mxu0 0.0
    %219 = vmatpush.msra.mxu0 0.0
    %220 = vmatpush.msra.mxu0 0.0
    %221 = vmatpush.msra.mxu0 0.0
    %222 = vmatpush.msra.mxu0 0.0
    %223 = vmatpush.msra.mxu0 0.0
    %224 = vmatpush.msra.mxu0 0.0
    %225 = vmatpush.msra.mxu0 0.0
    %226 = vmatpush.msra.mxu0 0.0
    %227 = vmatpush.msra.mxu0 %v182
    %228 = vmatmul.f32.gmra.mxu0 %v189
    %v229 = vpop.f32.mrf.mxu0
    %v230 = vadd.f32 %v185, %v229
    %231 = vmatmul.f32.gmra.mxu0 %v192
    %v232 = vpop.f32.mrf.mxu0
    %v233 = vadd.f32 %v185, %v232
    %234 = vmatmul.f32.gmra.mxu0 %v195
    %v235 = vpop.f32.mrf.mxu0
    %v236 = vadd.f32 %v185, %v235
    %237 = vmatmul.f32.gmra.mxu0 %v198
    %v238 = vpop.f32.mrf.mxu0
    %v239 = vadd.f32 %v185, %v238
    %240 = vmatmul.f32.gmra.mxu0 %v201
    %v241 = vpop.f32.mrf.mxu0
    %v242 = vadd.f32 %v185, %v241
    %243 = vmatmul.f32.gmra.mxu0 %v204
    %v244 = vpop.f32.mrf.mxu0
    %v245 = vadd.f32 %v185, %v244
    %246 = vmatmul.f32.gmra.mxu0 %v207
    %v247 = vpop.f32.mrf.mxu0
    %v248 = vadd.f32 %v185, %v247
    %249 = vmatmul.f32.gmra.mxu0 %v210
    %v250 = vpop.f32.mrf.mxu0
    %v251 = vadd.f32 %v185, %v250
    %252 = vdwg.mxu0
    %v253 = vld [vmem:[%s8] sm:$0xff]
    %v254 = vld [vmem:[%s8 + $0x8] sm:$0xff]
    %v255 = vld [vmem:[%s8 + $0x10] sm:$0xff]
    %v256 = vld [vmem:[%s8 + $0x18] sm:$0xff]
    %v257 = vld [vmem:[%s8 + $0x20] sm:$0xff]
    %v258 = vld [vmem:[%s8 + $0x28] sm:$0xff]
    %v259 = vld [vmem:[%s8 + $0x30] sm:$0xff]
    %v260 = vld [vmem:[%s8 + $0x38] sm:$0xff]
    %v261 = vld [vmem:[%s10] sm:$0x1]
    %v263 = vperm.slane %v261, 0
    %v265 = vadd.f32 %v230, 0.0
    %v266 = vxor.u32 %v265, 2147483648
    %v267 = vmul.f32 %v266, 1.442695
    %v268 = vpow.pop %v267
    %v269 = vadd.f32 %v268, 1.0
    %v270 = vrcp.pop %v269
    %v271 = vmul.f32 %v269, %v270
    %v272 = vsub.f32 1.0, %v271
    %v273 = vmul.f32 %v270, %v272
    %v274 = vadd.f32 %v270, %v273
    %vm275 = vweird.f32 %v269
    %vm276 = vweird.f32 %v270
    %vm277 = vmor %vm275, %vm276
    %v278 = vsel %vm277, %v270, %v274
    %v279 = vand.u32 2147483647, %v269
    %vm280 = vcmp.eq.f32.partialorder %v279, 8.507059e+37
    %v281 = vand.u32 %v269, 2147483648
    %v282 = vor.u32 1.1754944e-38, %v281
    %v283 = vsel %vm280, %v282, %v278
    %v284 = vmul.f32 1.0, %v283
    %v285 = vtanh.pop %v265
    %v286 = vmul.f32 %v284, 0.0
    %288 = vrot.lane.b32.xlu0 %v285, 64
    %v289 = vpop.permute.xlu0 %288
    %v291 = vmul.f32 %v173, %v289
    %v292 = vadd.f32 %v286, %v291
    %v293 = vtanh.pop %v292
    %295 = vrot.lane.b32.xlu0 %v293, 32
    %v296 = vpop.permute.xlu0 %295
    %v298 = vmul.f32 %v284, %v296
    %300 = vrot.lane.b32.xlu0 %v298, 96
    %v301 = vpop.permute.xlu0 %300
    %vm303 = vcmask 261120
    %v304 = vsel %vm303, %v301, 0.0
    %v305 = vpack.c.bf16 %v304, %v304
    %v314 = vunpack.c.l.b16 %v253
    %v315 = vunpack.c.h.b16 %v253
    %v316 = vunpack.c.l.b16 %v254
    %v317 = vunpack.c.h.b16 %v254
    %v318 = vunpack.c.l.b16 %v255
    %v319 = vunpack.c.h.b16 %v255
    %v320 = vunpack.c.l.b16 %v256
    %v321 = vunpack.c.h.b16 %v256
    %v322 = vunpack.c.l.b16 %v257
    %v323 = vunpack.c.h.b16 %v257
    %v324 = vunpack.c.l.b16 %v258
    %v325 = vunpack.c.h.b16 %v258
    %v326 = vunpack.c.l.b16 %v259
    %v327 = vunpack.c.h.b16 %v259
    %v328 = vunpack.c.l.b16 %v260
    %v329 = vunpack.c.h.b16 %v260
    %v330 = vpack.c.b16 %v316, %v314
    %v331 = vpack.c.b16 %v317, %v315
    %v332 = vpack.c.b16 %v320, %v318
    %v333 = vpack.c.b16 %v321, %v319
    %v334 = vpack.c.b16 %v324, %v322
    %v335 = vpack.c.b16 %v325, %v323
    %v336 = vpack.c.b16 %v328, %v326
    %v337 = vpack.c.b16 %v329, %v327
    %vm346 = vcmask 523264
    %v348 = vsel %vm346, %v305, 0
    %350 = vmatpush.bf16.msra.mxu0 0
    %351 = vmatpush.bf16.msra.mxu0 0
    %352 = vmatpush.bf16.msra.mxu0 0
    %353 = vmatpush.bf16.msra.mxu0 0
    %354 = vmatpush.bf16.msra.mxu0 %v336
    %355 = vmatpush.bf16.msra.mxu0 %v334
    %356 = vmatpush.bf16.msra.mxu0 %v332
    %357 = vmatpush.bf16.msra.mxu0 %v330
    %358 = vmatmul.bf16.gmra.mxu0 %v348
    %v359 = vpop.f32.mrf.mxu0
    %v360 = vadd.f32 0.0, %v359
    %v361 = vpop.f32.mrf.mxu0
    %362 = vdwg.mxu0
    %363 = vmatpush.bf16.msra.mxu0 0
    %364 = vmatpush.bf16.msra.mxu0 0
    %365 = vmatpush.bf16.msra.mxu0 0
    %366 = vmatpush.bf16.msra.mxu0 0
    %367 = vmatpush.bf16.msra.mxu0 %v337
    %368 = vmatpush.bf16.msra.mxu0 %v335
    %369 = vmatpush.bf16.msra.mxu0 %v333
    %370 = vmatpush.bf16.msra.mxu0 %v331
    %371 = vmatmul.bf16.gmra.mxu0 %v348
    %v372 = vpop.f32.mrf.mxu0
    %v373 = vadd.f32 0.0, %v372
    %v374 = vpop.f32.mrf.mxu0
    %375 = vdwg.mxu0
    %v376 = vadd.f32 %v360, %v263
    %v377 = vxor.u32 %v376, 2147483648
    %v378 = vmul.f32 %v377, 1.442695
    %v379 = vpow.pop %v378
    %v380 = vadd.f32 %v379, 1.0
    %v381 = vrcp.pop %v380
    %v382 = vmul.f32 %v380, %v381
    %v383 = vsub.f32 1.0, %v382
    %v384 = vmul.f32 %v381, %v383
    %v385 = vadd.f32 %v381, %v384
    %vm386 = vweird.f32 %v380
    %vm387 = vweird.f32 %v381
    %vm388 = vmor %vm386, %vm387
    %v389 = vsel %vm388, %v381, %v385
    %v390 = vand.u32 2147483647, %v380
    %vm391 = vcmp.eq.f32.partialorder %v390, 8.507059e+37
    %v392 = vand.u32 %v380, 2147483648
    %v393 = vor.u32 1.1754944e-38, %v392
    %v394 = vsel %vm391, %v393, %v389
    %v395 = vmul.f32 1.0, %v394
    %v396 = vtanh.pop %v376
    %v397 = vmul.f32 %v395, 0.0
    %399 = vrot.lane.b32.xlu0 %v396, 96
    %v400 = vpop.permute.xlu0 %399
    %v402 = vmul.f32 %v173, %v400
    %404 = vrot.lane.b32.xlu0 %v402, 96
    %v405 = vpop.permute.xlu0 %404
    %v407 = vadd.f32 %v397, %v405
    %v408 = vtanh.pop %v407
    %410 = vrot.lane.b32.xlu0 %v408, 32
    %v411 = vpop.permute.xlu0 %410
    %v413 = vmul.f32 %v395, %v411
    %416 = vrot.lane.b32.xlu0 %v360, 32
    %v417 = vpop.permute.xlu0 %416
    %418 = vrot.lane.b32.xlu0 %v373, 32
    %v419 = vpop.permute.xlu0 %418
    %v420 = vsel %vm303, %v417, %v419
    %v422 = vadd.f32 %v233, %v420
    %v423 = vxor.u32 %v422, 2147483648
    %v424 = vmul.f32 %v423, 1.442695
    %v425 = vpow.pop %v424
    %v426 = vadd.f32 %v425, 1.0
    %v427 = vrcp.pop %v426
    %v428 = vmul.f32 %v426, %v427
    %v429 = vsub.f32 1.0, %v428
    %v430 = vmul.f32 %v427, %v429
    %v431 = vadd.f32 %v427, %v430
    %vm432 = vweird.f32 %v426
    %vm433 = vweird.f32 %v427
    %vm434 = vmor %vm432, %vm433
    %v435 = vsel %vm434, %v427, %v431
    %v436 = vand.u32 2147483647, %v426
    %vm437 = vcmp.eq.f32.partialorder %v436, 8.507059e+37
    %v438 = vand.u32 %v426, 2147483648
    %v439 = vor.u32 1.1754944e-38, %v438
    %v440 = vsel %vm437, %v439, %v435
    %v441 = vmul.f32 1.0, %v440
    %v442 = vtanh.pop %v422
    %v443 = vmul.f32 %v441, %v292
    %445 = vrot.lane.b32.xlu0 %v442, 64
    %v446 = vpop.permute.xlu0 %445
    %v448 = vmul.f32 %v173, %v446
    %v449 = vadd.f32 %v443, %v448
    %v450 = vtanh.pop %v449
    %452 = vrot.lane.b32.xlu0 %v450, 32
    %v453 = vpop.permute.xlu0 %452
    %v455 = vmul.f32 %v441, %v453
    %457 = vrot.lane.b32.xlu0 %v455, 96
    %v458 = vpop.permute.xlu0 %457
    %v460 = vsel %vm303, %v458, %v413
    %v461 = vpack.c.bf16 %v460, %v460
    %v463 = vsel %vm346, %v461, 0
    %465 = vmatpush.bf16.msra.mxu0 0
    %466 = vmatpush.bf16.msra.mxu0 0
    %467 = vmatpush.bf16.msra.mxu0 0
    %468 = vmatpush.bf16.msra.mxu0 0
    %469 = vmatpush.bf16.msra.mxu0 %v336
    %470 = vmatpush.bf16.msra.mxu0 %v334
    %471 = vmatpush.bf16.msra.mxu0 %v332
    %472 = vmatpush.bf16.msra.mxu0 %v330
    %473 = vmatmul.bf16.gmra.mxu0 %v463
    %v474 = vpop.f32.mrf.mxu0
    %v475 = vadd.f32 0.0, %v474
    %v476 = vpop.f32.mrf.mxu0
    %477 = vdwg.mxu0
    %478 = vmatpush.bf16.msra.mxu0 0
    %479 = vmatpush.bf16.msra.mxu0 0
    %480 = vmatpush.bf16.msra.mxu0 0
    %481 = vmatpush.bf16.msra.mxu0 0
    %482 = vmatpush.bf16.msra.mxu0 %v337
    %483 = vmatpush.bf16.msra.mxu0 %v335
    %484 = vmatpush.bf16.msra.mxu0 %v333
    %485 = vmatpush.bf16.msra.mxu0 %v331
    %486 = vmatmul.bf16.gmra.mxu0 %v463
    %v487 = vpop.f32.mrf.mxu0
    %v488 = vadd.f32 0.0, %v487
    %v489 = vpop.f32.mrf.mxu0
    %490 = vdwg.mxu0
    %v491 = vadd.f32 %v475, %v263
    %v492 = vxor.u32 %v491, 2147483648
    %v493 = vmul.f32 %v492, 1.442695
    %v494 = vpow.pop %v493
    %v495 = vadd.f32 %v494, 1.0
    %v496 = vrcp.pop %v495
    %v497 = vmul.f32 %v495, %v496
    %v498 = vsub.f32 1.0, %v497
    %v499 = vmul.f32 %v496, %v498
    %v500 = vadd.f32 %v496, %v499
    %vm501 = vweird.f32 %v495
    %vm502 = vweird.f32 %v496
    %vm503 = vmor %vm501, %vm502
    %v504 = vsel %vm503, %v496, %v500
    %v505 = vand.u32 2147483647, %v495
    %vm506 = vcmp.eq.f32.partialorder %v505, 8.507059e+37
    %v507 = vand.u32 %v495, 2147483648
    %v508 = vor.u32 1.1754944e-38, %v507
    %v509 = vsel %vm506, %v508, %v504
    %v510 = vmul.f32 1.0, %v509
    %v511 = vtanh.pop %v491
    %v512 = vmul.f32 %v510, %v407
    %514 = vrot.lane.b32.xlu0 %v511, 96
    %v515 = vpop.permute.xlu0 %514
    %v517 = vmul.f32 %v173, %v515
    %519 = vrot.lane.b32.xlu0 %v517, 96
    %v520 = vpop.permute.xlu0 %519
    %v522 = vadd.f32 %v512, %v520
    %v523 = vtanh.pop %v522
    %525 = vrot.lane.b32.xlu0 %v523, 32
    %v526 = vpop.permute.xlu0 %525
    %v528 = vmul.f32 %v510, %v526
    %531 = vrot.lane.b32.xlu0 %v475, 32
    %v532 = vpop.permute.xlu0 %531
    %533 = vrot.lane.b32.xlu0 %v488, 32
    %v534 = vpop.permute.xlu0 %533
    %v535 = vsel %vm303, %v532, %v534
    %v537 = vadd.f32 %v236, %v535
    %v538 = vxor.u32 %v537, 2147483648
    %v539 = vmul.f32 %v538, 1.442695
    %v540 = vpow.pop %v539
    %v541 = vadd.f32 %v540, 1.0
    %v542 = vrcp.pop %v541
    %v543 = vmul.f32 %v541, %v542
    %v544 = vsub.f32 1.0, %v543
    %v545 = vmul.f32 %v542, %v544
    %v546 = vadd.f32 %v542, %v545
    %vm547 = vweird.f32 %v541
    %vm548 = vweird.f32 %v542
    %vm549 = vmor %vm547, %vm548
    %v550 = vsel %vm549, %v542, %v546
    %v551 = vand.u32 2147483647, %v541
    %vm552 = vcmp.eq.f32.partialorder %v551, 8.507059e+37
    %v553 = vand.u32 %v541, 2147483648
    %v554 = vor.u32 1.1754944e-38, %v553
    %v555 = vsel %vm552, %v554, %v550
    %v556 = vmul.f32 1.0, %v555
    %v557 = vtanh.pop %v537
    %v558 = vmul.f32 %v556, %v449
    %560 = vrot.lane.b32.xlu0 %v557, 64
    %v561 = vpop.permute.xlu0 %560
    %v563 = vmul.f32 %v173, %v561
    %v564 = vadd.f32 %v558, %v563
    %v565 = vtanh.pop %v564
    %567 = vrot.lane.b32.xlu0 %v565, 32
    %v568 = vpop.permute.xlu0 %567
    %v570 = vmul.f32 %v556, %v568
    %572 = vrot.lane.b32.xlu0 %v570, 96
    %v573 = vpop.permute.xlu0 %572
    %v575 = vsel %vm303, %v573, %v528
    %v576 = vpack.c.bf16 %v575, %v575
    %v578 = vsel %vm346, %v576, 0
    %580 = vmatpush.bf16.msra.mxu0 0
    %581 = vmatpush.bf16.msra.mxu0 0
    %582 = vmatpush.bf16.msra.mxu0 0
    %583 = vmatpush.bf16.msra.mxu0 0
    %584 = vmatpush.bf16.msra.mxu0 %v336
    %585 = vmatpush.bf16.msra.mxu0 %v334
    %586 = vmatpush.bf16.msra.mxu0 %v332
    %587 = vmatpush.bf16.msra.mxu0 %v330
    %588 = vmatmul.bf16.gmra.mxu0 %v578
    %v589 = vpop.f32.mrf.mxu0
    %v590 = vadd.f32 0.0, %v589
    %v591 = vpop.f32.mrf.mxu0
    %592 = vdwg.mxu0
    %593 = vmatpush.bf16.msra.mxu0 0
    %594 = vmatpush.bf16.msra.mxu0 0
    %595 = vmatpush.bf16.msra.mxu0 0
    %596 = vmatpush.bf16.msra.mxu0 0
    %597 = vmatpush.bf16.msra.mxu0 %v337
    %598 = vmatpush.bf16.msra.mxu0 %v335
    %599 = vmatpush.bf16.msra.mxu0 %v333
    %600 = vmatpush.bf16.msra.mxu0 %v331
    %601 = vmatmul.bf16.gmra.mxu0 %v578
    %v602 = vpop.f32.mrf.mxu0
    %v603 = vadd.f32 0.0, %v602
    %v604 = vpop.f32.mrf.mxu0
    %605 = vdwg.mxu0
    %v606 = vadd.f32 %v590, %v263
    %v607 = vxor.u32 %v606, 2147483648
    %v608 = vmul.f32 %v607, 1.442695
    %v609 = vpow.pop %v608
    %v610 = vadd.f32 %v609, 1.0
    %v611 = vrcp.pop %v610
    %v612 = vmul.f32 %v610, %v611
    %v613 = vsub.f32 1.0, %v612
    %v614 = vmul.f32 %v611, %v613
    %v615 = vadd.f32 %v611, %v614
    %vm616 = vweird.f32 %v610
    %vm617 = vweird.f32 %v611
    %vm618 = vmor %vm616, %vm617
    %v619 = vsel %vm618, %v611, %v615
    %v620 = vand.u32 2147483647, %v610
    %vm621 = vcmp.eq.f32.partialorder %v620, 8.507059e+37
    %v622 = vand.u32 %v610, 2147483648
    %v623 = vor.u32 1.1754944e-38, %v622
    %v624 = vsel %vm621, %v623, %v619
    %v625 = vmul.f32 1.0, %v624
    %v626 = vtanh.pop %v606
    %v627 = vmul.f32 %v625, %v522
    %629 = vrot.lane.b32.xlu0 %v626, 96
    %v630 = vpop.permute.xlu0 %629
    %v632 = vmul.f32 %v173, %v630
    %634 = vrot.lane.b32.xlu0 %v632, 96
    %v635 = vpop.permute.xlu0 %634
    %v637 = vadd.f32 %v627, %v635
    %v638 = vtanh.pop %v637
    %640 = vrot.lane.b32.xlu0 %v638, 32
    %v641 = vpop.permute.xlu0 %640
    %v643 = vmul.f32 %v625, %v641
    %646 = vrot.lane.b32.xlu0 %v590, 32
    %v647 = vpop.permute.xlu0 %646
    %648 = vrot.lane.b32.xlu0 %v603, 32
    %v649 = vpop.permute.xlu0 %648
    %v650 = vsel %vm303, %v647, %v649
    %v652 = vadd.f32 %v239, %v650
    %v653 = vxor.u32 %v652, 2147483648
    %v654 = vmul.f32 %v653, 1.442695
    %v655 = vpow.pop %v654
    %v656 = vadd.f32 %v655, 1.0
    %v657 = vrcp.pop %v656
    %v658 = vmul.f32 %v656, %v657
    %v659 = vsub.f32 1.0, %v658
    %v660 = vmul.f32 %v657, %v659
    %v661 = vadd.f32 %v657, %v660
    %vm662 = vweird.f32 %v656
    %vm663 = vweird.f32 %v657
    %vm664 = vmor %vm662, %vm663
    %v665 = vsel %vm664, %v657, %v661
    %v666 = vand.u32 2147483647, %v656
    %vm667 = vcmp.eq.f32.partialorder %v666, 8.507059e+37
    %v668 = vand.u32 %v656, 2147483648
    %v669 = vor.u32 1.1754944e-38, %v668
    %v670 = vsel %vm667, %v669, %v665
    %v671 = vmul.f32 1.0, %v670
    %v672 = vtanh.pop %v652
    %v673 = vmul.f32 %v671, %v564
    %675 = vrot.lane.b32.xlu0 %v672, 64
    %v676 = vpop.permute.xlu0 %675
    %v678 = vmul.f32 %v173, %v676
    %v679 = vadd.f32 %v673, %v678
    %v680 = vtanh.pop %v679
    %682 = vrot.lane.b32.xlu0 %v680, 32
    %v683 = vpop.permute.xlu0 %682
    %v685 = vmul.f32 %v671, %v683
    %687 = vrot.lane.b32.xlu0 %v685, 96
    %v688 = vpop.permute.xlu0 %687
    %v690 = vsel %vm303, %v688, %v643
    %v691 = vpack.c.bf16 %v690, %v690
    %v693 = vsel %vm346, %v691, 0
    %695 = vmatpush.bf16.msra.mxu0 0
    %696 = vmatpush.bf16.msra.mxu0 0
    %697 = vmatpush.bf16.msra.mxu0 0
    %698 = vmatpush.bf16.msra.mxu0 0
    %699 = vmatpush.bf16.msra.mxu0 %v336
    %700 = vmatpush.bf16.msra.mxu0 %v334
    %701 = vmatpush.bf16.msra.mxu0 %v332
    %702 = vmatpush.bf16.msra.mxu0 %v330
    %703 = vmatmul.bf16.gmra.mxu0 %v693
    %v704 = vpop.f32.mrf.mxu0
    %v705 = vadd.f32 0.0, %v704
    %v706 = vpop.f32.mrf.mxu0
    %707 = vdwg.mxu0
    %708 = vmatpush.bf16.msra.mxu0 0
    %709 = vmatpush.bf16.msra.mxu0 0
    %710 = vmatpush.bf16.msra.mxu0 0
    %711 = vmatpush.bf16.msra.mxu0 0
    %712 = vmatpush.bf16.msra.mxu0 %v337
    %713 = vmatpush.bf16.msra.mxu0 %v335
    %714 = vmatpush.bf16.msra.mxu0 %v333
    %715 = vmatpush.bf16.msra.mxu0 %v331
    %716 = vmatmul.bf16.gmra.mxu0 %v693
    %v717 = vpop.f32.mrf.mxu0
    %v718 = vadd.f32 0.0, %v717
    %v719 = vpop.f32.mrf.mxu0
    %720 = vdwg.mxu0
    %v721 = vadd.f32 %v705, %v263
    %v722 = vxor.u32 %v721, 2147483648
    %v723 = vmul.f32 %v722, 1.442695
    %v724 = vpow.pop %v723
    %v725 = vadd.f32 %v724, 1.0
    %v726 = vrcp.pop %v725
    %v727 = vmul.f32 %v725, %v726
    %v728 = vsub.f32 1.0, %v727
    %v729 = vmul.f32 %v726, %v728
    %v730 = vadd.f32 %v726, %v729
    %vm731 = vweird.f32 %v725
    %vm732 = vweird.f32 %v726
    %vm733 = vmor %vm731, %vm732
    %v734 = vsel %vm733, %v726, %v730
    %v735 = vand.u32 2147483647, %v725
    %vm736 = vcmp.eq.f32.partialorder %v735, 8.507059e+37
    %v737 = vand.u32 %v725, 2147483648
    %v738 = vor.u32 1.1754944e-38, %v737
    %v739 = vsel %vm736, %v738, %v734
    %v740 = vmul.f32 1.0, %v739
    %v741 = vtanh.pop %v721
    %v742 = vmul.f32 %v740, %v637
    %744 = vrot.lane.b32.xlu0 %v741, 96
    %v745 = vpop.permute.xlu0 %744
    %v747 = vmul.f32 %v173, %v745
    %749 = vrot.lane.b32.xlu0 %v747, 96
    %v750 = vpop.permute.xlu0 %749
    %v752 = vadd.f32 %v742, %v750
    %v753 = vtanh.pop %v752
    %755 = vrot.lane.b32.xlu0 %v753, 32
    %v756 = vpop.permute.xlu0 %755
    %v758 = vmul.f32 %v740, %v756
    %761 = vrot.lane.b32.xlu0 %v705, 32
    %v762 = vpop.permute.xlu0 %761
    %763 = vrot.lane.b32.xlu0 %v718, 32
    %v764 = vpop.permute.xlu0 %763
    %v765 = vsel %vm303, %v762, %v764
    %v767 = vadd.f32 %v242, %v765
    %v768 = vxor.u32 %v767, 2147483648
    %v769 = vmul.f32 %v768, 1.442695
    %v770 = vpow.pop %v769
    %v771 = vadd.f32 %v770, 1.0
    %v772 = vrcp.pop %v771
    %v773 = vmul.f32 %v771, %v772
    %v774 = vsub.f32 1.0, %v773
    %v775 = vmul.f32 %v772, %v774
    %v776 = vadd.f32 %v772, %v775
    %vm777 = vweird.f32 %v771
    %vm778 = vweird.f32 %v772
    %vm779 = vmor %vm777, %vm778
    %v780 = vsel %vm779, %v772, %v776
    %v781 = vand.u32 2147483647, %v771
    %vm782 = vcmp.eq.f32.partialorder %v781, 8.507059e+37
    %v783 = vand.u32 %v771, 2147483648
    %v784 = vor.u32 1.1754944e-38, %v783
    %v785 = vsel %vm782, %v784, %v780
    %v786 = vmul.f32 1.0, %v785
    %v787 = vtanh.pop %v767
    %v788 = vmul.f32 %v786, %v679
    %790 = vrot.lane.b32.xlu0 %v787, 64
    %v791 = vpop.permute.xlu0 %790
    %v793 = vmul.f32 %v173, %v791
    %v794 = vadd.f32 %v788, %v793
    %v795 = vtanh.pop %v794
    %797 = vrot.lane.b32.xlu0 %v795, 32
    %v798 = vpop.permute.xlu0 %797
    %v800 = vmul.f32 %v786, %v798
    %802 = vrot.lane.b32.xlu0 %v800, 96
    %v803 = vpop.permute.xlu0 %802
    %v805 = vsel %vm303, %v803, %v758
    %v806 = vpack.c.bf16 %v805, %v805
    %v808 = vsel %vm346, %v806, 0
    %810 = vmatpush.bf16.msra.mxu0 0
    %811 = vmatpush.bf16.msra.mxu0 0
    %812 = vmatpush.bf16.msra.mxu0 0
    %813 = vmatpush.bf16.msra.mxu0 0
    %814 = vmatpush.bf16.msra.mxu0 %v336
    %815 = vmatpush.bf16.msra.mxu0 %v334
    %816 = vmatpush.bf16.msra.mxu0 %v332
    %817 = vmatpush.bf16.msra.mxu0 %v330
    %818 = vmatmul.bf16.gmra.mxu0 %v808
    %v819 = vpop.f32.mrf.mxu0
    %v820 = vadd.f32 0.0, %v819
    %v821 = vpop.f32.mrf.mxu0
    %822 = vdwg.mxu0
    %823 = vmatpush.bf16.msra.mxu0 0
    %824 = vmatpush.bf16.msra.mxu0 0
    %825 = vmatpush.bf16.msra.mxu0 0
    %826 = vmatpush.bf16.msra.mxu0 0
    %827 = vmatpush.bf16.msra.mxu0 %v337
    %828 = vmatpush.bf16.msra.mxu0 %v335
    %829 = vmatpush.bf16.msra.mxu0 %v333
    %830 = vmatpush.bf16.msra.mxu0 %v331
    %831 = vmatmul.bf16.gmra.mxu0 %v808
    %v832 = vpop.f32.mrf.mxu0
    %v833 = vadd.f32 0.0, %v832
    %v834 = vpop.f32.mrf.mxu0
    %835 = vdwg.mxu0
    %v836 = vadd.f32 %v820, %v263
    %v837 = vxor.u32 %v836, 2147483648
    %v838 = vmul.f32 %v837, 1.442695
    %v839 = vpow.pop %v838
    %v840 = vadd.f32 %v839, 1.0
    %v841 = vrcp.pop %v840
    %v842 = vmul.f32 %v840, %v841
    %v843 = vsub.f32 1.0, %v842
    %v844 = vmul.f32 %v841, %v843
    %v845 = vadd.f32 %v841, %v844
    %vm846 = vweird.f32 %v840
    %vm847 = vweird.f32 %v841
    %vm848 = vmor %vm846, %vm847
    %v849 = vsel %vm848, %v841, %v845
    %v850 = vand.u32 2147483647, %v840
    %vm851 = vcmp.eq.f32.partialorder %v850, 8.507059e+37
    %v852 = vand.u32 %v840, 2147483648
    %v853 = vor.u32 1.1754944e-38, %v852
    %v854 = vsel %vm851, %v853, %v849
    %v855 = vmul.f32 1.0, %v854
    %v856 = vtanh.pop %v836
    %v857 = vmul.f32 %v855, %v752
    %859 = vrot.lane.b32.xlu0 %v856, 96
    %v860 = vpop.permute.xlu0 %859
    %v862 = vmul.f32 %v173, %v860
    %864 = vrot.lane.b32.xlu0 %v862, 96
    %v865 = vpop.permute.xlu0 %864
    %v867 = vadd.f32 %v857, %v865
    %v868 = vtanh.pop %v867
    %870 = vrot.lane.b32.xlu0 %v868, 32
    %v871 = vpop.permute.xlu0 %870
    %v873 = vmul.f32 %v855, %v871
    %876 = vrot.lane.b32.xlu0 %v820, 32
    %v877 = vpop.permute.xlu0 %876
    %878 = vrot.lane.b32.xlu0 %v833, 32
    %v879 = vpop.permute.xlu0 %878
    %v880 = vsel %vm303, %v877, %v879
    %v882 = vadd.f32 %v245, %v880
    %v883 = vxor.u32 %v882, 2147483648
    %v884 = vmul.f32 %v883, 1.442695
    %v885 = vpow.pop %v884
    %v886 = vadd.f32 %v885, 1.0
    %v887 = vrcp.pop %v886
    %v888 = vmul.f32 %v886, %v887
    %v889 = vsub.f32 1.0, %v888
    %v890 = vmul.f32 %v887, %v889
    %v891 = vadd.f32 %v887, %v890
    %vm892 = vweird.f32 %v886
    %vm893 = vweird.f32 %v887
    %vm894 = vmor %vm892, %vm893
    %v895 = vsel %vm894, %v887, %v891
    %v896 = vand.u32 2147483647, %v886
    %vm897 = vcmp.eq.f32.partialorder %v896, 8.507059e+37
    %v898 = vand.u32 %v886, 2147483648
    %v899 = vor.u32 1.1754944e-38, %v898
    %v900 = vsel %vm897, %v899, %v895
    %v901 = vmul.f32 1.0, %v900
    %v902 = vtanh.pop %v882
    %v903 = vmul.f32 %v901, %v794
    %905 = vrot.lane.b32.xlu0 %v902, 64
    %v906 = vpop.permute.xlu0 %905
    %v908 = vmul.f32 %v173, %v906
    %v909 = vadd.f32 %v903, %v908
    %v910 = vtanh.pop %v909
    %912 = vrot.lane.b32.xlu0 %v910, 32
    %v913 = vpop.permute.xlu0 %912
    %v915 = vmul.f32 %v901, %v913
    %917 = vrot.lane.b32.xlu0 %v915, 96
    %v918 = vpop.permute.xlu0 %917
    %v920 = vsel %vm303, %v918, %v873
    %v921 = vpack.c.bf16 %v920, %v920
    %v923 = vsel %vm346, %v921, 0
    %925 = vmatpush.bf16.msra.mxu0 0
    %926 = vmatpush.bf16.msra.mxu0 0
    %927 = vmatpush.bf16.msra.mxu0 0
    %928 = vmatpush.bf16.msra.mxu0 0
    %929 = vmatpush.bf16.msra.mxu0 %v336
    %930 = vmatpush.bf16.msra.mxu0 %v334
    %931 = vmatpush.bf16.msra.mxu0 %v332
    %932 = vmatpush.bf16.msra.mxu0 %v330
    %933 = vmatmul.bf16.gmra.mxu0 %v923
    %v934 = vpop.f32.mrf.mxu0
    %v935 = vadd.f32 0.0, %v934
    %v936 = vpop.f32.mrf.mxu0
    %937 = vdwg.mxu0
    %938 = vmatpush.bf16.msra.mxu0 0
    %939 = vmatpush.bf16.msra.mxu0 0
    %940 = vmatpush.bf16.msra.mxu0 0
    %941 = vmatpush.bf16.msra.mxu0 0
    %942 = vmatpush.bf16.msra.mxu0 %v337
    %943 = vmatpush.bf16.msra.mxu0 %v335
    %944 = vmatpush.bf16.msra.mxu0 %v333
    %945 = vmatpush.bf16.msra.mxu0 %v331
    %946 = vmatmul.bf16.gmra.mxu0 %v923
    %v947 = vpop.f32.mrf.mxu0
    %v948 = vadd.f32 0.0, %v947
    %v949 = vpop.f32.mrf.mxu0
    %950 = vdwg.mxu0
    %v951 = vadd.f32 %v935, %v263
    %v952 = vxor.u32 %v951, 2147483648
    %v953 = vmul.f32 %v952, 1.442695
    %v954 = vpow.pop %v953
    %v955 = vadd.f32 %v954, 1.0
    %v956 = vrcp.pop %v955
    %v957 = vmul.f32 %v955, %v956
    %v958 = vsub.f32 1.0, %v957
    %v959 = vmul.f32 %v956, %v958
    %v960 = vadd.f32 %v956, %v959
    %vm961 = vweird.f32 %v955
    %vm962 = vweird.f32 %v956
    %vm963 = vmor %vm961, %vm962
    %v964 = vsel %vm963, %v956, %v960
    %v965 = vand.u32 2147483647, %v955
    %vm966 = vcmp.eq.f32.partialorder %v965, 8.507059e+37
    %v967 = vand.u32 %v955, 2147483648
    %v968 = vor.u32 1.1754944e-38, %v967
    %v969 = vsel %vm966, %v968, %v964
    %v970 = vmul.f32 1.0, %v969
    %v971 = vtanh.pop %v951
    %v972 = vmul.f32 %v970, %v867
    %974 = vrot.lane.b32.xlu0 %v971, 96
    %v975 = vpop.permute.xlu0 %974
    %v977 = vmul.f32 %v173, %v975
    %979 = vrot.lane.b32.xlu0 %v977, 96
    %v980 = vpop.permute.xlu0 %979
    %v982 = vadd.f32 %v972, %v980
    %v983 = vtanh.pop %v982
    %985 = vrot.lane.b32.xlu0 %v983, 32
    %v986 = vpop.permute.xlu0 %985
    %v988 = vmul.f32 %v970, %v986
    %991 = vrot.lane.b32.xlu0 %v935, 32
    %v992 = vpop.permute.xlu0 %991
    %993 = vrot.lane.b32.xlu0 %v948, 32
    %v994 = vpop.permute.xlu0 %993
    %v995 = vsel %vm303, %v992, %v994
    %v997 = vadd.f32 %v248, %v995
    %v998 = vxor.u32 %v997, 2147483648
    %v999 = vmul.f32 %v998, 1.442695
    %v1000 = vpow.pop %v999
    %v1001 = vadd.f32 %v1000, 1.0
    %v1002 = vrcp.pop %v1001
    %v1003 = vmul.f32 %v1001, %v1002
    %v1004 = vsub.f32 1.0, %v1003
    %v1005 = vmul.f32 %v1002, %v1004
    %v1006 = vadd.f32 %v1002, %v1005
    %vm1007 = vweird.f32 %v1001
    %vm1008 = vweird.f32 %v1002
    %vm1009 = vmor %vm1007, %vm1008
    %v1010 = vsel %vm1009, %v1002, %v1006
    %v1011 = vand.u32 2147483647, %v1001
    %vm1012 = vcmp.eq.f32.partialorder %v1011, 8.507059e+37
    %v1013 = vand.u32 %v1001, 2147483648
    %v1014 = vor.u32 1.1754944e-38, %v1013
    %v1015 = vsel %vm1012, %v1014, %v1010
    %v1016 = vmul.f32 1.0, %v1015
    %v1017 = vtanh.pop %v997
    %v1018 = vmul.f32 %v1016, %v909
    %1020 = vrot.lane.b32.xlu0 %v1017, 64
    %v1021 = vpop.permute.xlu0 %1020
    %v1023 = vmul.f32 %v173, %v1021
    %v1024 = vadd.f32 %v1018, %v1023
    %v1025 = vtanh.pop %v1024
    %1027 = vrot.lane.b32.xlu0 %v1025, 32
    %v1028 = vpop.permute.xlu0 %1027
    %v1030 = vmul.f32 %v1016, %v1028
    %1032 = vrot.lane.b32.xlu0 %v1030, 96
    %v1033 = vpop.permute.xlu0 %1032
    %v1035 = vsel %vm303, %v1033, %v988
    %v1036 = vpack.c.bf16 %v1035, %v1035
    %v1038 = vsel %vm346, %v1036, 0
    %1040 = vmatpush.bf16.msra.mxu0 0
    %1041 = vmatpush.bf16.msra.mxu0 0
    %1042 = vmatpush.bf16.msra.mxu0 0
    %1043 = vmatpush.bf16.msra.mxu0 0
    %1044 = vmatpush.bf16.msra.mxu0 %v336
    %1045 = vmatpush.bf16.msra.mxu0 %v334
    %1046 = vmatpush.bf16.msra.mxu0 %v332
    %1047 = vmatpush.bf16.msra.mxu0 %v330
    %1048 = vmatmul.bf16.gmra.mxu0 %v1038
    %v1049 = vpop.f32.mrf.mxu0
    %v1050 = vadd.f32 0.0, %v1049
    %v1051 = vpop.f32.mrf.mxu0
    %1052 = vdwg.mxu0
    %1053 = vmatpush.bf16.msra.mxu0 0
    %1054 = vmatpush.bf16.msra.mxu0 0
    %1055 = vmatpush.bf16.msra.mxu0 0
    %1056 = vmatpush.bf16.msra.mxu0 0
    %1057 = vmatpush.bf16.msra.mxu0 %v337
    %1058 = vmatpush.bf16.msra.mxu0 %v335
    %1059 = vmatpush.bf16.msra.mxu0 %v333
    %1060 = vmatpush.bf16.msra.mxu0 %v331
    %1061 = vmatmul.bf16.gmra.mxu0 %v1038
    %v1062 = vpop.f32.mrf.mxu0
    %v1063 = vadd.f32 0.0, %v1062
    %v1064 = vpop.f32.mrf.mxu0
    %1065 = vdwg.mxu0
    %v1066 = vadd.f32 %v1050, %v263
    %v1067 = vxor.u32 %v1066, 2147483648
    %v1068 = vmul.f32 %v1067, 1.442695
    %v1069 = vpow.pop %v1068
    %v1070 = vadd.f32 %v1069, 1.0
    %v1071 = vrcp.pop %v1070
    %v1072 = vmul.f32 %v1070, %v1071
    %v1073 = vsub.f32 1.0, %v1072
    %v1074 = vmul.f32 %v1071, %v1073
    %v1075 = vadd.f32 %v1071, %v1074
    %vm1076 = vweird.f32 %v1070
    %vm1077 = vweird.f32 %v1071
    %vm1078 = vmor %vm1076, %vm1077
    %v1079 = vsel %vm1078, %v1071, %v1075
    %v1080 = vand.u32 2147483647, %v1070
    %vm1081 = vcmp.eq.f32.partialorder %v1080, 8.507059e+37
    %v1082 = vand.u32 %v1070, 2147483648
    %v1083 = vor.u32 1.1754944e-38, %v1082
    %v1084 = vsel %vm1081, %v1083, %v1079
    %v1085 = vmul.f32 1.0, %v1084
    %v1086 = vtanh.pop %v1066
    %v1087 = vmul.f32 %v1085, %v982
    %1089 = vrot.lane.b32.xlu0 %v1086, 96
    %v1090 = vpop.permute.xlu0 %1089
    %v1092 = vmul.f32 %v173, %v1090
    %1094 = vrot.lane.b32.xlu0 %v1092, 96
    %v1095 = vpop.permute.xlu0 %1094
    %v1097 = vadd.f32 %v1087, %v1095
    %v1098 = vtanh.pop %v1097
    %1100 = vrot.lane.b32.xlu0 %v1098, 32
    %v1101 = vpop.permute.xlu0 %1100
    %v1103 = vmul.f32 %v1085, %v1101
    %1106 = vrot.lane.b32.xlu0 %v1050, 32
    %v1107 = vpop.permute.xlu0 %1106
    %1108 = vrot.lane.b32.xlu0 %v1063, 32
    %v1109 = vpop.permute.xlu0 %1108
    %v1110 = vsel %vm303, %v1107, %v1109
    %v1112 = vadd.f32 %v251, %v1110
    %v1113 = vxor.u32 %v1112, 2147483648
    %v1114 = vmul.f32 %v1113, 1.442695
    %v1115 = vpow.pop %v1114
    %v1116 = vadd.f32 %v1115, 1.0
    %v1117 = vrcp.pop %v1116
    %v1118 = vmul.f32 %v1116, %v1117
    %v1119 = vsub.f32 1.0, %v1118
    %v1120 = vmul.f32 %v1117, %v1119
    %v1121 = vadd.f32 %v1117, %v1120
    %vm1122 = vweird.f32 %v1116
    %vm1123 = vweird.f32 %v1117
    %vm1124 = vmor %vm1122, %vm1123
    %v1125 = vsel %vm1124, %v1117, %v1121
    %v1126 = vand.u32 2147483647, %v1116
    %vm1127 = vcmp.eq.f32.partialorder %v1126, 8.507059e+37
    %v1128 = vand.u32 %v1116, 2147483648
    %v1129 = vor.u32 1.1754944e-38, %v1128
    %v1130 = vsel %vm1127, %v1129, %v1125
    %v1131 = vmul.f32 1.0, %v1130
    %v1132 = vtanh.pop %v1112
    %v1133 = vmul.f32 %v1131, %v1024
    %1135 = vrot.lane.b32.xlu0 %v1132, 64
    %v1136 = vpop.permute.xlu0 %1135
    %v1138 = vmul.f32 %v173, %v1136
    %v1139 = vadd.f32 %v1133, %v1138
    %v1140 = vtanh.pop %v1139
    %1142 = vrot.lane.b32.xlu0 %v1140, 32
    %v1143 = vpop.permute.xlu0 %1142
    %v1145 = vmul.f32 %v1131, %v1143
    %1147 = vrot.lane.b32.xlu0 %v1145, 96
    %v1148 = vpop.permute.xlu0 %1147
    %v1150 = vsel %vm303, %v1148, %v1103
    %v1151 = vpack.c.bf16 %v1150, %v1150
    %v1153 = vsel %vm346, %v1151, 0
    %1155 = vmatpush.bf16.msra.mxu0 0
    %1156 = vmatpush.bf16.msra.mxu0 0
    %1157 = vmatpush.bf16.msra.mxu0 0
    %1158 = vmatpush.bf16.msra.mxu0 0
    %1159 = vmatpush.bf16.msra.mxu0 %v336
    %1160 = vmatpush.bf16.msra.mxu0 %v334
    %1161 = vmatpush.bf16.msra.mxu0 %v332
    %1162 = vmatpush.bf16.msra.mxu0 %v330
    %1163 = vmatmul.bf16.gmra.mxu0 %v1153
    %v1164 = vpop.f32.mrf.mxu0
    %v1165 = vadd.f32 0.0, %v1164
    %v1166 = vpop.f32.mrf.mxu0
    %1167 = vdwg.mxu0
    %v1168 = vadd.f32 %v1165, %v263
    %v1169 = vxor.u32 %v1168, 2147483648
    %v1170 = vmul.f32 %v1169, 1.442695
    %v1171 = vpow.pop %v1170
    %v1172 = vadd.f32 %v1171, 1.0
    %v1173 = vrcp.pop %v1172
    %v1174 = vmul.f32 %v1172, %v1173
    %v1175 = vsub.f32 1.0, %v1174
    %v1176 = vmul.f32 %v1173, %v1175
    %v1177 = vadd.f32 %v1173, %v1176
    %vm1178 = vweird.f32 %v1172
    %vm1179 = vweird.f32 %v1173
    %vm1180 = vmor %vm1178, %vm1179
    %v1181 = vsel %vm1180, %v1173, %v1177
    %v1182 = vand.u32 2147483647, %v1172
    %vm1183 = vcmp.eq.f32.partialorder %v1182, 8.507059e+37
    %v1184 = vand.u32 %v1172, 2147483648
    %v1185 = vor.u32 1.1754944e-38, %v1184
    %v1186 = vsel %vm1183, %v1185, %v1181
    %v1187 = vmul.f32 1.0, %v1186
    %v1188 = vtanh.pop %v1168
    %v1189 = vmul.f32 %v1187, %v1097
    %1191 = vrot.lane.b32.xlu0 %v1188, 96
    %v1192 = vpop.permute.xlu0 %1191
    %v1194 = vmul.f32 %v173, %v1192
    %1196 = vrot.lane.b32.xlu0 %v1194, 96
    %v1197 = vpop.permute.xlu0 %1196
    %v1199 = vadd.f32 %v1189, %v1197
    %v1200 = vtanh.pop %v1199
    %1202 = vrot.lane.b32.xlu0 %v1200, 32
    %v1203 = vpop.permute.xlu0 %1202
    %v1205 = vmul.f32 %v1187, %v1203
    %v1206 = vld [vmem:[#allocation4] sm:$0xff]
    %1208 = vrot.lane.b32.xlu0 %v1205, 96
    %v1209 = vpop.permute.xlu0 %1208
    %1212 = vrot.lane.b32.xlu0 %v1206, 32
    %v1213 = vpop.permute.xlu0 %1212
    %v1215 = vsel %vm303, %v1209, %v1213
    %v1216 = vld [vmem:[%s11] sm:$0xff]
    %v1217 = vld [vmem:[%s11 + $0x8] sm:$0xff]
    %v1218 = vld [vmem:[%s11 + $0x10] sm:$0xff]
    %v1219 = vld [vmem:[%s11 + $0x18] sm:$0xff]
    %v1220 = vld [vmem:[%s11 + $0x20] sm:$0xff]
    %v1221 = vld [vmem:[%s12] sm:$0x1]
    %v1223 = vperm.slane %v1221, 0
    %vm1225 = vcmask 326656
    %v1227 = vsel %vm1225, %v1215, 0
    %1229 = vmatpush.msra.mxu0 0.0
    %1230 = vmatpush.msra.mxu0 0.0
    %1231 = vmatpush.msra.mxu0 0.0
    %1232 = vmatpush.msra.mxu0 0.0
    %1233 = vmatpush.msra.mxu0 0.0
    %1234 = vmatpush.msra.mxu0 0.0
    %1235 = vmatpush.msra.mxu0 0.0
    %1236 = vmatpush.msra.mxu0 0.0
    %1237 = vmatpush.msra.mxu0 0.0
    %1238 = vmatpush.msra.mxu0 0.0
    %1239 = vmatpush.msra.mxu0 0.0
    %1240 = vmatpush.msra.mxu0 %v1220
    %1241 = vmatpush.msra.mxu0 %v1219
    %1242 = vmatpush.msra.mxu0 %v1218
    %1243 = vmatpush.msra.mxu0 %v1217
    %1244 = vmatpush.msra.mxu0 %v1216
    %1245 = vmatmul.f32.gmra.mxu0 %v1227
    %v1246 = vpop.f32.mrf.mxu0
    %v1247 = vadd.f32 %v1223, %v1246
    %1248 = vdwg.mxu0
    %v1249 = vmax.f32 %v1247, 0.0
    %v1250 = vld [vmem:[%s13] sm:$0xff]
    %v1251 = vld [vmem:[%s13 + $0x8] sm:$0xff]
    %v1252 = vld [vmem:[%s13 + $0x10] sm:$0xff]
    %v1253 = vld [vmem:[%s13 + $0x18] sm:$0xff]
    %v1254 = vld [vmem:[%s13 + $0x20] sm:$0xff]
    %v1255 = vld [vmem:[%s13 + $0x28] sm:$0xff]
    %v1256 = vld [vmem:[%s13 + $0x30] sm:$0xff]
    %v1257 = vld [vmem:[%s13 + $0x38] sm:$0xff]
    %v1258 = vld [vmem:[%s14] sm:$0x1]
    %v1260 = vperm.slane %v1258, 0
    %v1263 = vsel %vm346, %v1249, 0
    %1265 = vmatpush.msra.mxu0 0.0
    %1266 = vmatpush.msra.mxu0 0.0
    %1267 = vmatpush.msra.mxu0 0.0
    %1268 = vmatpush.msra.mxu0 0.0
    %1269 = vmatpush.msra.mxu0 0.0
    %1270 = vmatpush.msra.mxu0 0.0
    %1271 = vmatpush.msra.mxu0 0.0
    %1272 = vmatpush.msra.mxu0 0.0
    %1273 = vmatpush.msra.mxu0 %v1257
    %1274 = vmatpush.msra.mxu0 %v1256
    %1275 = vmatpush.msra.mxu0 %v1255
    %1276 = vmatpush.msra.mxu0 %v1254
    %1277 = vmatpush.msra.mxu0 %v1253
    %1278 = vmatpush.msra.mxu0 %v1252
    %1279 = vmatpush.msra.mxu0 %v1251
    %1280 = vmatpush.msra.mxu0 %v1250
    %1281 = vmatmul.f32.gmra.mxu0 %v1263
    %v1282 = vpop.f32.mrf.mxu0
    %v1283 = vadd.f32 %v1260, %v1282
    %1284 = vdwg.mxu0
    %vm1285 = vcmask 31744
    %1286 = vst.msk [vmem:[%s15] sm:$0xff] %vm1285, %v1283
    // Predicated region
    $region82: #{tpu_custom_call.1} parent=1 // pred_check
      _
    $region83: #{tpu_custom_call.1} parent=1 // pred_check_branch
      %1288 = sbr.rel (0) target = $region85
    $region84: #{tpu_custom_call.1} parent=1 // pred_region
      _
    $region85: #{tpu_custom_call.1} parent=1 // pred_fallthru
      _
    // Predicated region
    $region86: #{tpu_custom_call.1} parent=1 // pred_check
      _
    $region87: #{tpu_custom_call.1} parent=1 // pred_check_branch
      %1290 = sbr.rel (0) target = $region89
    $region88: #{tpu_custom_call.1} parent=1 // pred_region
      _
    $region89: #{tpu_custom_call.1} parent=1 // pred_fallthru
      _
    %1291 = vsyncpa [#allocation3], 1
    %1292 = vsyncpa [#allocation5], 1
    %1293 = vsyncpa [#allocation8], 1

</llo_original>
